<compile_context>
chip_gen: v5e
topology: v5e:2x2
jax: 0.10.0
libtpu: 0.0.40
codegen_flags: <defaults>
</compile_context>

<pallas_src>
import jax
import jax.numpy as jnp
from jax import lax
from jax.experimental import pallas as pl
from jax.experimental.pallas import tpu as pltpu

EPS = 1e-5
LANE = 128


def _round_up(n, m):
    return (n + m - 1) // m * m


def _pick_row_block(total, cap=512):
    """Largest multiple of 8 that divides `total`, capped (v7x-safe) at 512."""
    blk = min(cap, total)
    blk -= blk % 8
    while blk > 8 and total % blk:
        blk -= 8
    return max(blk, 8)


def _colmask(HW, W, C):
    """(HW, 3*C) 0/1 mask zeroing the wrapped left/right column taps."""
    col = jnp.arange(HW, dtype=jnp.int32) % W
    ml = jnp.broadcast_to((col > 0).astype(jnp.float32)[:, None], (HW, C))
    mc = jnp.ones((HW, C), jnp.float32)
    mr = jnp.broadcast_to((col < W - 1).astype(jnp.float32)[:, None], (HW, C))
    return jnp.concatenate([ml, mc, mr], axis=1)


# --------------------------------------------------------------------------
# Shared in-kernel tap builder: (HW, C) image -> (HW, 9*C) conv3x3 taps.
# Column order: kh-major, kw-minor, channels innermost -- matches a
# (3, 3, Cin, Cout) -> (9*Cin, Cout) weight reshape.
# --------------------------------------------------------------------------
def _conv3x3_taps(h, colmask, W, out_dtype):
    HW, C = h.shape
    left = pltpu.roll(h, shift=1, axis=0)         # pixel (r, c-1)  -> kw = 0
    right = pltpu.roll(h, shift=HW - 1, axis=0)   # pixel (r, c+1)  -> kw = 2
    mid = jnp.concatenate([left, h, right], axis=1) * colmask          # kh = 1
    row = lax.broadcasted_iota(jnp.int32, mid.shape, 0)
    up = jnp.where(row >= W, pltpu.roll(mid, shift=W, axis=0), 0.0)    # kh = 0
    down = jnp.where(row < HW - W,
                     pltpu.roll(mid, shift=HW - W, axis=0), 0.0)       # kh = 2
    return jnp.concatenate([up, mid, down], axis=1).astype(out_dtype)


# --------------------------------------------------------------------------
# Kernel 1: conv1 (nine taps folded into a single K=9*Cin_p matmul) + bias
#           + one-pass partial BN1 statistics from the f32 accumulator.
# --------------------------------------------------------------------------
def _make_conv1_kernel(W, mxu_dtype):
    def kernel(x_ref, cm_ref, w_ref, b_ref, c1_ref, st_ref):
        h = x_ref[...].astype(jnp.float32)
        taps = _conv3x3_taps(h, cm_ref[...], W, mxu_dtype)
        y = jnp.dot(taps, w_ref[...], preferred_element_type=jnp.float32)
        y = y + b_ref[...]
        c1_ref[...] = y.astype(c1_ref.dtype)
        s = jnp.sum(y, axis=0, keepdims=True)
        ss = jnp.sum(y * y, axis=0, keepdims=True)
        st_ref[...] = jnp.concatenate(
            [s, ss, jnp.zeros((6, y.shape[1]), jnp.float32)], axis=0)
    return kernel


# --------------------------------------------------------------------------
# Kernel 2: bn1 (folded scale/shift) + relu + conv2 as ONE K=9*Cp matmul
#           + one-pass partial BN2 statistics.  One image per grid step.
# TODO(synk): for very large H*W on v7x (64 MiB VMEM/TC), block the HW axis
# with a one-image-row halo instead of one whole image per grid step.
# --------------------------------------------------------------------------
def _make_bn1_conv2_kernel(W, mxu_dtype):
    def kernel(c1_ref, sc_ref, sh_ref, cm_ref, w_ref, b_ref, c2_ref, st_ref):
        h = jnp.maximum(
            c1_ref[...].astype(jnp.float32) * sc_ref[...] + sh_ref[...], 0.0)
        taps = _conv3x3_taps(h, cm_ref[...], W, mxu_dtype)
        y = jnp.dot(taps, w_ref[...], preferred_element_type=jnp.float32)
        y = y + b_ref[...]
        c2_ref[...] = y.astype(c2_ref.dtype)
        s = jnp.sum(y, axis=0, keepdims=True)
        ss = jnp.sum(y * y, axis=0, keepdims=True)
        st_ref[...] = jnp.concatenate(
            [s, ss, jnp.zeros((6, y.shape[1]), jnp.float32)], axis=0)
    return kernel


# --------------------------------------------------------------------------
# Kernel 3: bn2 (folded) + residual (identity = conv1 output) + relu.
# --------------------------------------------------------------------------
def _bn2_res_relu_kernel(c2_ref, id_ref, sc_ref, sh_ref, o_ref):
    o = (c2_ref[...].astype(jnp.float32) * sc_ref[...] + sh_ref[...]
         + id_ref[...].astype(jnp.float32))
    o_ref[...] = jnp.maximum(o, 0.0)


# --------------------------------------------------------------------------
# Wrapper
# --------------------------------------------------------------------------
def basic_res_block(x_nchw, params, mxu_dtype=jnp.bfloat16, store_dtype=None):
    """x_nchw: (B, Cin, H, W) float32 (PyTorch layout). Returns (B, Cout, H, W)."""
    if store_dtype is None:
        store_dtype = mxu_dtype
    B, Cin, H, W = x_nchw.shape
    Cout = params["w1"].shape[0]
    assert W % 8 == 0, "W must be a multiple of 8 (sublane-aligned row shifts)"
    HW, BHW = H * W, B * H * W
    Cip = _round_up(Cin, LANE)
    Cp = _round_up(Cout, LANE)
    n = float(BHW)
    f32 = jnp.float32

    row_blk = _pick_row_block(BHW, 512)
    nblk = BHW // row_blk

    cparams = pltpu.CompilerParams(
        dimension_semantics=("parallel",),
        vmem_limit_bytes=32 * 1024 * 1024)

    # ---- layout plumbing (lane-dense, channel-padded, narrow MXU operands) ----
    # TODO(synk): keep activations NHWC/channel-padded across consecutive
    # blocks to drop the boundary transpose/pad passes entirely.
    x = jnp.transpose(x_nchw, (0, 2, 3, 1)).reshape(BHW, Cin)
    x = jnp.pad(x, ((0, 0), (0, Cip - Cin))).astype(mxu_dtype)

    def conv_weight(w, cin, cinp):
        co = w.shape[0]
        wm = jnp.transpose(w, (2, 3, 1, 0))                         # (3,3,cin,co)
        wm = jnp.pad(wm, ((0, 0), (0, 0), (0, cinp - cin), (0, Cp - co)))
        return wm.reshape(9 * cinp, Cp).astype(mxu_dtype)

    w1m = conv_weight(params["w1"], Cin, Cip)
    w2m = conv_weight(params["w2"], Cout, Cp)
    b1 = jnp.pad(params["b1"], (0, Cp - Cout)).reshape(1, Cp).astype(f32)
    b2 = jnp.pad(params["b2"], (0, Cp - Cout)).reshape(1, Cp).astype(f32)
    g1 = jnp.pad(params["g1"], (0, Cp - Cout)).astype(f32)
    be1 = jnp.pad(params["be1"], (0, Cp - Cout)).astype(f32)
    g2 = jnp.pad(params["g2"], (0, Cp - Cout)).astype(f32)
    be2 = jnp.pad(params["be2"], (0, Cp - Cout)).astype(f32)

    # resident W-border masks (constant index_map -> fetched once, stays in VMEM)
    cm1 = _colmask(HW, W, Cip)
    cm2 = cm1 if Cp == Cip else _colmask(HW, W, Cp)

    # ---- kernel 1: conv1 + partial BN1 stats (one image per grid step) ----
    conv1, st1 = pl.pallas_call(
        _make_conv1_kernel(W, mxu_dtype),
        grid=(B,),
        in_specs=[pl.BlockSpec((HW, Cip), lambda b: (b, 0)),
                  pl.BlockSpec((HW, 3 * Cip), lambda b: (0, 0)),
                  pl.BlockSpec((9 * Cip, Cp), lambda b: (0, 0)),
                  pl.BlockSpec((1, Cp), lambda b: (0, 0))],
        out_specs=[pl.BlockSpec((HW, Cp), lambda b: (b, 0)),
                   pl.BlockSpec((8, Cp), lambda b: (b, 0))],
        out_shape=[jax.ShapeDtypeStruct((BHW, Cp), store_dtype),
                   jax.ShapeDtypeStruct((B * 8, Cp), f32)],
        compiler_params=cparams,
    )(x, cm1, w1m, b1)

    # ---- finalize bn1 (tiny per-channel XLA math; keeps grid axes parallel) ----
    st1 = st1.reshape(B, 8, Cp)
    mean1 = jnp.sum(st1[:, 0, :], axis=0) / n
    # TODO(synk): one-pass E[x^2]-E[x]^2 variance; switch to a compensated /
    # two-pass scheme if |mean| >> std at production batch/feature sizes.
    var1 = jnp.maximum(jnp.sum(st1[:, 1, :], axis=0) / n - mean1 * mean1, 0.0)
    scale1 = g1 * lax.rsqrt(var1 + EPS)
    shift1 = be1 - mean1 * scale1
    scale1, shift1 = scale1.reshape(1, Cp), shift1.reshape(1, Cp)

    # ---- kernel 2: bn1 + relu + conv2 (single K=9*Cp matmul) + BN2 stats ----
    conv2, st2 = pl.pallas_call(
        _make_bn1_conv2_kernel(W, mxu_dtype),
        grid=(B,),
        in_specs=[pl.BlockSpec((HW, Cp), lambda b: (b, 0)),
                  pl.BlockSpec((1, Cp), lambda b: (0, 0)),
                  pl.BlockSpec((1, Cp), lambda b: (0, 0)),
                  pl.BlockSpec((HW, 3 * Cp), lambda b: (0, 0)),
                  pl.BlockSpec((9 * Cp, Cp), lambda b: (0, 0)),
                  pl.BlockSpec((1, Cp), lambda b: (0, 0))],
        out_specs=[pl.BlockSpec((HW, Cp), lambda b: (b, 0)),
                   pl.BlockSpec((8, Cp), lambda b: (b, 0))],
        out_shape=[jax.ShapeDtypeStruct((BHW, Cp), store_dtype),
                   jax.ShapeDtypeStruct((B * 8, Cp), f32)],
        compiler_params=cparams,
    )(conv1, scale1, shift1, cm2, w2m, b2)

    # ---- finalize bn2 ----
    st2 = st2.reshape(B, 8, Cp)
    mean2 = jnp.sum(st2[:, 0, :], axis=0) / n
    var2 = jnp.maximum(jnp.sum(st2[:, 1, :], axis=0) / n - mean2 * mean2, 0.0)
    scale2 = g2 * lax.rsqrt(var2 + EPS)
    shift2 = be2 - mean2 * scale2
    scale2, shift2 = scale2.reshape(1, Cp), shift2.reshape(1, Cp)

    # ---- kernel 3: bn2 + residual + relu (lane-dense streaming elementwise) ----
    out = pl.pallas_call(
        _bn2_res_relu_kernel,
        grid=(nblk,),
        in_specs=[pl.BlockSpec((row_blk, Cp), lambda i: (i, 0)),
                  pl.BlockSpec((row_blk, Cp), lambda i: (i, 0)),
                  pl.BlockSpec((1, Cp), lambda i: (0, 0)),
                  pl.BlockSpec((1, Cp), lambda i: (0, 0))],
        out_specs=pl.BlockSpec((row_blk, Cp), lambda i: (i, 0)),
        out_shape=jax.ShapeDtypeStruct((BHW, Cp), f32),
        compiler_params=cparams,
    )(conv2, conv1, scale2, shift2)

    out = out.reshape(B, H, W, Cp)[:, :, :, :Cout]        # drop channel padding
    return jnp.transpose(out, (0, 3, 1, 2))               # NHWC -> NCHW


# --------------------------------------------------------------------------
# Pure-JAX reference mirroring the PyTorch forward (training-mode BN, f32).
# --------------------------------------------------------------------------
def reference(x, params):
    dn = ("NCHW", "OIHW", "NCHW")

    def conv(t, w, b):
        y = lax.conv_general_dilated(
            t, w, (1, 1), ((1, 1), (1, 1)), dimension_numbers=dn,
            precision=lax.Precision.HIGHEST,
            preferred_element_type=jnp.float32)
        return y + b[None, :, None, None]

    def bn(t, g, beta):
        m = t.mean(axis=(0, 2, 3), keepdims=True)
        v = ((t - m) ** 2).mean(axis=(0, 2, 3), keepdims=True)
        return (t - m) * lax.rsqrt(v + EPS) * g[None, :, None, None] \
            + beta[None, :, None, None]

    c1 = conv(x, params["w1"], params["b1"])
    identity = c1
    h = jax.nn.relu(bn(c1, params["g1"], params["be1"]))
    c2 = conv(h, params["w2"], params["b2"])
    return jax.nn.relu(bn(c2, params["g2"], params["be2"]) + identity)


def init_params(key, in_channels, out_channels):
    k1, k2, k3, k4 = jax.random.split(key, 4)
    return {
        "w1": 0.1 * jax.random.normal(k1, (out_channels, in_channels, 3, 3), jnp.float32),
        "b1": 0.1 * jax.random.normal(k2, (out_channels,), jnp.float32),
        "g1": jnp.ones((out_channels,), jnp.float32),     # BatchNorm default init
        "be1": jnp.zeros((out_channels,), jnp.float32),
        "w2": 0.1 * jax.random.normal(k3, (out_channels, out_channels, 3, 3), jnp.float32),
        "b2": 0.1 * jax.random.normal(k4, (out_channels,), jnp.float32),
        "g2": jnp.ones((out_channels,), jnp.float32),
        "be2": jnp.zeros((out_channels,), jnp.float32),
    }


if __name__ == "__main__":
    key = jax.random.PRNGKey(0)
    kx, kp = jax.random.split(key)

    B, Cin, Cout, H, W = 2, 4, 8, 16, 16
    x = jax.random.normal(kx, (B, Cin, H, W), jnp.float32)
    params = init_params(kp, Cin, Cout)

    ref = jax.block_until_ready(reference(x, params))

    # Fast path: bf16 MXU operands + bf16 inter-kernel intermediates.
    out = jax.block_until_ready(basic_res_block(x, params))
    assert out.shape == (B, Cout, H, W)
    err = float(jnp.max(jnp.abs(out - ref)))
    assert jnp.allclose(out, ref, atol=5e-2, rtol=5e-2), \
        f"bf16 path max abs err {err}"

    # Precision check: full-f32 operands and intermediates against the f32
    # reference (tolerance leaves margin for MXU multi-pass f32 emulation).
    out32 = jax.block_until_ready(
        basic_res_block(x, params, mxu_dtype=jnp.float32))
    err32 = float(jnp.max(jnp.abs(out32 - ref)))
    assert jnp.allclose(out32, ref, atol=2e-2, rtol=2e-2), \
        f"f32 path max abs err {err32}"

    # TODO(synk): BatchNorm running_mean/running_var buffer updates
    # (training-time side effect of the PyTorch module) are not produced here.
    print("KERNEL_OK")
</pallas_src>

<mosaic_0001>
module attributes {stable_mosaic.version = 11 : i64} {
  func.func @kernel(%arg0: i32, %arg1: memref<256x128xbf16, #tpu.memory_space<vmem>>, %arg2: memref<256x384xf32, #tpu.memory_space<vmem>>, %arg3: memref<1152x128xbf16, #tpu.memory_space<vmem>>, %arg4: memref<1x128xf32, #tpu.memory_space<vmem>>, %arg5: memref<256x128xbf16, #tpu.memory_space<vmem>>, %arg6: memref<8x128xf32, #tpu.memory_space<vmem>>) attributes {dimension_semantics = [#tpu.dimension_semantics<parallel>], iteration_bounds = array<i64: 2>, scalar_prefetch = 0 : i64, scratch_operands = 0 : i64, tpu.core_type = #tpu.core_type<tc>, window_params = [{transform_indices = @transform_0, window_bounds = array<i64: 256, 128>}, {pipeline_mode = #tpu.pipeline_mode<synchronous>, transform_indices = @transform_1, window_bounds = array<i64: 256, 384>}, {pipeline_mode = #tpu.pipeline_mode<synchronous>, transform_indices = @transform_2, window_bounds = array<i64: 1152, 128>}, {pipeline_mode = #tpu.pipeline_mode<synchronous>, transform_indices = @transform_3, window_bounds = array<i64: 1, 128>}, {transform_indices = @transform_4, window_bounds = array<i64: 256, 128>}, {transform_indices = @transform_5, window_bounds = array<i64: 8, 128>}]} {
    %c0 = arith.constant 0 : index
    %c0_0 = arith.constant 0 : index
    %0 = vector.load %arg1[%c0, %c0_0] : memref<256x128xbf16, #tpu.memory_space<vmem>>, vector<256x128xbf16>
    %1 = arith.extf %0 : vector<256x128xbf16> to vector<256x128xf32>
    %c0_1 = arith.constant 0 : index
    %c0_2 = arith.constant 0 : index
    %2 = vector.load %arg2[%c0_1, %c0_2] : memref<256x384xf32, #tpu.memory_space<vmem>>, vector<256x384xf32>
    %c1_i32 = arith.constant 1 : i32
    %3 = tpu.dynamic_rotate %1 by %c1_i32 dim 0 : vector<256x128xf32>, i32 -> vector<256x128xf32>
    %c255_i32 = arith.constant 255 : i32
    %4 = tpu.dynamic_rotate %1 by %c255_i32 dim 0 : vector<256x128xf32>, i32 -> vector<256x128xf32>
    %5 = tpu.concatenate %3, %1, %4 in 1 : vector<256x128xf32>, vector<256x128xf32>, vector<256x128xf32> -> vector<256x384xf32>
    %6 = arith.mulf %5, %2 : vector<256x384xf32>
    %7 = tpu.iota {dimensions = array<i32: 0>} : vector<256x384xi32>
    %c16_i32 = arith.constant 16 : i32
    %8 = vector.broadcast %c16_i32 : i32 to vector<256x384xi32>
    %9 = arith.cmpi sge, %7, %8 : vector<256x384xi32>
    %c16_i32_3 = arith.constant 16 : i32
    %10 = tpu.dynamic_rotate %6 by %c16_i32_3 dim 0 : vector<256x384xf32>, i32 -> vector<256x384xf32>
    %cst = arith.constant 0.000000e+00 : f32
    %11 = vector.broadcast %cst : f32 to vector<256x384xf32>
    %12 = arith.select %9, %10, %11 : vector<256x384xi1>, vector<256x384xf32>
    %c240_i32 = arith.constant 240 : i32
    %13 = vector.broadcast %c240_i32 : i32 to vector<256x384xi32>
    %14 = arith.cmpi slt, %7, %13 : vector<256x384xi32>
    %c240_i32_4 = arith.constant 240 : i32
    %15 = tpu.dynamic_rotate %6 by %c240_i32_4 dim 0 : vector<256x384xf32>, i32 -> vector<256x384xf32>
    %cst_5 = arith.constant 0.000000e+00 : f32
    %16 = vector.broadcast %cst_5 : f32 to vector<256x384xf32>
    %17 = arith.select %14, %15, %16 : vector<256x384xi1>, vector<256x384xf32>
    %18 = tpu.concatenate %12, %6, %17 in 1 : vector<256x384xf32>, vector<256x384xf32>, vector<256x384xf32> -> vector<256x1152xf32>
    %19 = arith.truncf %18 : vector<256x1152xf32> to vector<256x1152xbf16>
    %c0_6 = arith.constant 0 : index
    %c0_7 = arith.constant 0 : index
    %20 = vector.load %arg3[%c0_6, %c0_7] : memref<1152x128xbf16, #tpu.memory_space<vmem>>, vector<1152x128xbf16>
    %cst_8 = arith.constant dense<0.000000e+00> : vector<256x128xf32>
    %21 = tpu.matmul %19, %20, %cst_8 {dimension_numbers = #tpu.dot_dimension_numbers<[1], [0], [0], [1], [0, 0, 1, 1], [], []>} : vector<256x1152xbf16>, vector<1152x128xbf16>, vector<256x128xf32> -> vector<256x128xf32>
    %c0_9 = arith.constant 0 : index
    %c0_10 = arith.constant 0 : index
    %22 = vector.load %arg4[%c0_9, %c0_10] : memref<1x128xf32, #tpu.memory_space<vmem>>, vector<1x128xf32>
    %23 = vector.broadcast %22 : vector<1x128xf32> to vector<256x128xf32>
    %24 = arith.addf %21, %23 : vector<256x128xf32>
    %25 = arith.truncf %24 : vector<256x128xf32> to vector<256x128xbf16>
    %c0_11 = arith.constant 0 : index
    %c0_12 = arith.constant 0 : index
    %26 = vector.load %arg5[%c0_11, %c0_12] : memref<256x128xbf16, #tpu.memory_space<vmem>>, vector<256x128xbf16>
    tpu.vector_store %arg5[%c0_11, %c0_12], %25 {strides = array<i32>} : memref<256x128xbf16, #tpu.memory_space<vmem>>, vector<256x128xbf16>,
    %cst_13 = arith.constant dense<0.000000e+00> : vector<128xf32>
    %27 = vector.multi_reduction <add>, %24, %cst_13 [0] : vector<256x128xf32> to vector<128xf32>
    %28 = vector.shape_cast %27 : vector<128xf32> to vector<1x128xf32>
    %29 = arith.mulf %24, %24 : vector<256x128xf32>
    %cst_14 = arith.constant dense<0.000000e+00> : vector<128xf32>
    %30 = vector.multi_reduction <add>, %29, %cst_14 [0] : vector<256x128xf32> to vector<128xf32>
    %31 = vector.shape_cast %30 : vector<128xf32> to vector<1x128xf32>
    %cst_15 = arith.constant 0.000000e+00 : f32
    %32 = vector.broadcast %cst_15 : f32 to vector<6x128xf32>
    %33 = tpu.concatenate %28, %31, %32 in 0 : vector<1x128xf32>, vector<1x128xf32>, vector<6x128xf32> -> vector<8x128xf32>
    %c0_16 = arith.constant 0 : index
    %c0_17 = arith.constant 0 : index
    %34 = vector.load %arg6[%c0_16, %c0_17] : memref<8x128xf32, #tpu.memory_space<vmem>>, vector<8x128xf32>
    tpu.vector_store %arg6[%c0_16, %c0_17], %33 {strides = array<i32>} : memref<8x128xf32, #tpu.memory_space<vmem>>, vector<8x128xf32>,
    return
  }
  func.func @transform_0(%arg0: i32) -> (i32, i32) {
    %c0_i32 = arith.constant 0 : i32
    %c0_i32_0 = arith.constant 0 : i32
    return %arg0, %c0_i32 : i32, i32
  }
  func.func @transform_1(%arg0: i32) -> (i32, i32) {
    %c0_i32 = arith.constant 0 : i32
    %c0_i32_0 = arith.constant 0 : i32
    %c0_i32_1 = arith.constant 0 : i32
    return %c0_i32, %c0_i32_0 : i32, i32
  }
  func.func @transform_2(%arg0: i32) -> (i32, i32) {
    %c0_i32 = arith.constant 0 : i32
    %c0_i32_0 = arith.constant 0 : i32
    %c0_i32_1 = arith.constant 0 : i32
    return %c0_i32, %c0_i32_0 : i32, i32
  }
  func.func @transform_3(%arg0: i32) -> (i32, i32) {
    %c0_i32 = arith.constant 0 : i32
    %c0_i32_0 = arith.constant 0 : i32
    %c0_i32_1 = arith.constant 0 : i32
    return %c0_i32, %c0_i32_0 : i32, i32
  }
  func.func @transform_4(%arg0: i32) -> (i32, i32) {
    %c0_i32 = arith.constant 0 : i32
    %c0_i32_0 = arith.constant 0 : i32
    return %arg0, %c0_i32 : i32, i32
  }
  func.func @transform_5(%arg0: i32) -> (i32, i32) {
    %c0_i32 = arith.constant 0 : i32
    %c0_i32_0 = arith.constant 0 : i32
    return %arg0, %c0_i32 : i32, i32
  }
}

</mosaic_0001>

<llo_original>
// kernel: tpu_custom_call.1
$region0: #{tpu_custom_call.1}
  #allocation0 [shape = 'u32[]', space=smem, size = 0x4, offset = 0x4, fixed_abs, tag = 'smem constant byte address 0x4 - core index']
  #allocation1 [shape = 'u32[72,128]{1,0:T(1,128)}', space=vmem, size = 0x9000, scoped, tag = 'internal scratch']
  %s0 = inlined_call_operand.hbm [shape: bf16[512,128], index: 0, kind: input, shape index: {}]
  %s1 = inlined_call_operand.hbm [shape: f32[256,384], index: 1, kind: input, shape index: {}]
  %s2 = inlined_call_operand.hbm [shape: bf16[1152,128], index: 2, kind: input, shape index: {}]
  %s3 = inlined_call_operand.vmem [shape: f32[1,128], index: 3, kind: input, shape index: {}]
  %s4 = inlined_call_operand.hbm [shape: bf16[512,128], index: 4, kind: output, shape index: {0}]
  %s5 = inlined_call_operand.hbm [shape: f32[16,128], index: 5, kind: output, shape index: {1}]
  %6 = xla_tuple %s4, %s5
  %s7 = sld [smem:[#allocation0]]
  $region69: #{tpu_custom_call.1} parent=0
    _
  %s9 = ssub.s32 1, %s7
  %s10 = scalar_select 0, %s9, %s7
  $region1: #{tpu_custom_call.1} parent=0
    #allocation2 [shape = 'u8[131072]{0}', space=vmem, size = 0x20000, scoped, tag = 'input window, operand 0']
    #allocation3 [shape = 's32[2]{0}', space=sflag, size = 0x8, scoped, tag = 'scoped memory for tpu_custom_call.1']
    #allocation4 [shape = 's32[2]{0}', space=sflag, size = 0x8, scoped, tag = 'scoped memory for tpu_custom_call.1']
    #allocation5 [shape = 'u8[393216]{0}', space=vmem, size = 0x60000, scoped, tag = 'input window, operand 1, single buffered']
    #allocation6 [shape = 's32[1]{0}', space=sflag, size = 0x4, scoped, tag = 'scoped memory for tpu_custom_call.1']
    #allocation7 [shape = 'u8[294912]{0}', space=vmem, size = 0x48000, scoped, tag = 'input window, operand 2, single buffered']
    #allocation8 [shape = 'u8[131072]{0}', space=vmem, size = 0x20000, scoped, tag = 'output window, operand 0']
    #allocation9 [shape = 'u8[8192]{0}', space=vmem, size = 0x2000, scoped, tag = 'output window, operand 1']
    #allocation10 [shape = 's32[2]{0}', space=sflag, size = 0x8, scoped, tag = 'scoped memory for tpu_custom_call.1']
    %11 = vsyncpa [#allocation3], 0
    %s12 = scalar_lea.sflag [#allocation3], 1
    %13 = vsyncpa %s12, 0
    %14 = vsyncpa [#allocation6], 0
    %15 = vsyncpa [#allocation4], 0
    %s16 = scalar_lea.sflag [#allocation4], 1
    %17 = vsyncpa %s16, 0
    %18 = vsyncpa [#allocation10], 0
    %s19 = scalar_lea.sflag [#allocation10], 1
    %20 = vsyncpa %s19, 0
    loop: start=0, step=1, limit=4
    $region2: #{tpu_custom_call.1} parent=1 // loop_pre_header
      _
    $region3: #{tpu_custom_call.1} parent=1 // loop_header
      %s22 = sphi 0, %s26
      %p23 = scmp.ge.s32.totalorder %s22, 4
      %s32 = sphi 0, %s34
      %s35 = sphi 0, %s32
      %s36 = sphi 0, %s35
      %s52 = sphi 0, %s36
      %s56 = sphi 0, %s56
      %s58 = sphi 0, %s56
      %s59 = sphi 0, %s58
      %s73 = sphi 0, %s59
      %s77 = sphi 0, %s77
      %s79 = sphi 0, %s77
      %s80 = sphi 0, %s79
      %s94 = sphi 0, %s80
      %s98 = sphi 0, %s98
      %s100 = sphi 0, %s98
      %s101 = sphi 0, %s100
      %s115 = sphi 0, %s101
      %s121 = sphi 0, %s123
      %s124 = sphi 0, %s121
      %s125 = sphi 0, %s124
      %s141 = sphi 0, %s125
      %s147 = sphi 0, %s149
      %s150 = sphi 0, %s147
      %s151 = sphi 0, %s150
      %s167 = sphi 0, %s151
    $region4: #{tpu_custom_call.1} parent=1 // loop_header_branch
      %25 = sbr.rel (%p23) target = $region8
    $region5: #{tpu_custom_call.1} parent=1 // loop_body
      %s27 = ssub.s32 %s22, 1
      %s28 = ssub.s32 %s22, 2
      %s29 = sadd.s32 %s22, 1
      %s30 = ssub.s32 %s22, %s29
      %p31 = scmp.eq.s32.totalorder %s30, 0
      %s33 = sadd.s32 %s32, 1
      %s34 = scalar_select %p31, %s32, %s33
      %p37 = pneg %p31
      %p38 = scmp.eq.s32.totalorder %s22, 1
      %p39 = por %p37, %p38
      %p40 = scmp.ne.s32.totalorder %s32, %s35
      %p41 = scmp.eq.s32.totalorder %s22, 0
      %p42 = por %p40, %p41
      %p43 = scmp.ne.s32.totalorder %s32, %s35
      %p44 = scmp.eq.s32.totalorder %s27, 1
      %p45 = por %p43, %p44
      %p46 = scmp.ne.s32.totalorder %s35, %s36
      %p47 = scmp.eq.s32.totalorder %s27, 0
      %p48 = por %p46, %p47
      %p49 = scmp.ne.s32.totalorder %s35, %s36
      %p50 = scmp.eq.s32.totalorder %s28, 1
      %p51 = por %p49, %p50
      %p53 = scmp.ne.s32.totalorder %s36, %s52
      %p54 = scmp.eq.s32.totalorder %s28, 0
      %p55 = por %p53, %p54
      %s57 = sadd.s32 %s56, 1
      %p60 = scmp.eq.s32.totalorder %s22, 1
      %p61 = scmp.ne.s32.totalorder %s56, %s58
      %p62 = scmp.eq.s32.totalorder %s22, 0
      %p63 = por %p61, %p62
      %p64 = scmp.ne.s32.totalorder %s56, %s58
      %p65 = scmp.eq.s32.totalorder %s27, 1
      %p66 = por %p64, %p65
      %p67 = scmp.ne.s32.totalorder %s58, %s59
      %p68 = scmp.eq.s32.totalorder %s27, 0
      %p69 = por %p67, %p68
      %p70 = scmp.ne.s32.totalorder %s58, %s59
      %p71 = scmp.eq.s32.totalorder %s28, 1
      %p72 = por %p70, %p71
      %p74 = scmp.ne.s32.totalorder %s59, %s73
      %p75 = scmp.eq.s32.totalorder %s28, 0
      %p76 = por %p74, %p75
      %s78 = sadd.s32 %s77, 1
      %p81 = scmp.eq.s32.totalorder %s22, 1
      %p82 = scmp.ne.s32.totalorder %s77, %s79
      %p83 = scmp.eq.s32.totalorder %s22, 0
      %p84 = por %p82, %p83
      %p85 = scmp.ne.s32.totalorder %s77, %s79
      %p86 = scmp.eq.s32.totalorder %s27, 1
      %p87 = por %p85, %p86
      %p88 = scmp.ne.s32.totalorder %s79, %s80
      %p89 = scmp.eq.s32.totalorder %s27, 0
      %p90 = por %p88, %p89
      %p91 = scmp.ne.s32.totalorder %s79, %s80
      %p92 = scmp.eq.s32.totalorder %s28, 1
      %p93 = por %p91, %p92
      %p95 = scmp.ne.s32.totalorder %s80, %s94
      %p96 = scmp.eq.s32.totalorder %s28, 0
      %p97 = por %p95, %p96
      %s99 = sadd.s32 %s98, 1
      %p102 = scmp.eq.s32.totalorder %s22, 1
      %p103 = scmp.ne.s32.totalorder %s98, %s100
      %p104 = scmp.eq.s32.totalorder %s22, 0
      %p105 = por %p103, %p104
      %p106 = scmp.ne.s32.totalorder %s98, %s100
      %p107 = scmp.eq.s32.totalorder %s27, 1
      %p108 = por %p106, %p107
      %p109 = scmp.ne.s32.totalorder %s100, %s101
      %p110 = scmp.eq.s32.totalorder %s27, 0
      %p111 = por %p109, %p110
      %p112 = scmp.ne.s32.totalorder %s100, %s101
      %p113 = scmp.eq.s32.totalorder %s28, 1
      %p114 = por %p112, %p113
      %p116 = scmp.ne.s32.totalorder %s101, %s115
      %p117 = scmp.eq.s32.totalorder %s28, 0
      %p118 = por %p116, %p117
      %s119 = ssub.s32 %s22, %s29
      %p120 = scmp.eq.s32.totalorder %s119, 0
      %s122 = sadd.s32 %s121, 1
      %s123 = scalar_select %p120, %s121, %s122
      %p126 = pneg %p120
      %p127 = scmp.eq.s32.totalorder %s22, 1
      %p128 = por %p126, %p127
      %p129 = scmp.ne.s32.totalorder %s121, %s124
      %p130 = scmp.eq.s32.totalorder %s22, 0
      %p131 = por %p129, %p130
      %p132 = scmp.ne.s32.totalorder %s121, %s124
      %p133 = scmp.eq.s32.totalorder %s27, 1
      %p134 = por %p132, %p133
      %p135 = scmp.ne.s32.totalorder %s124, %s125
      %p136 = scmp.eq.s32.totalorder %s27, 0
      %p137 = por %p135, %p136
      %p138 = scmp.ne.s32.totalorder %s124, %s125
      %p139 = scmp.eq.s32.totalorder %s28, 1
      %p140 = por %p138, %p139
      %p142 = scmp.ne.s32.totalorder %s125, %s141
      %p143 = scmp.eq.s32.totalorder %s28, 0
      %p144 = por %p142, %p143
      %s145 = ssub.s32 %s22, %s29
      %p146 = scmp.eq.s32.totalorder %s145, 0
      %s148 = sadd.s32 %s147, 1
      %s149 = scalar_select %p146, %s147, %s148
      %p152 = pneg %p146
      %p153 = scmp.eq.s32.totalorder %s22, 1
      %p154 = por %p152, %p153
      %p155 = scmp.ne.s32.totalorder %s147, %s150
      %p156 = scmp.eq.s32.totalorder %s22, 0
      %p157 = por %p155, %p156
      %p158 = scmp.ne.s32.totalorder %s147, %s150
      %p159 = scmp.eq.s32.totalorder %s27, 1
      %p160 = por %p158, %p159
      %p161 = scmp.ne.s32.totalorder %s150, %s151
      %p162 = scmp.eq.s32.totalorder %s27, 0
      %p163 = por %p161, %p162
      %p164 = scmp.ne.s32.totalorder %s150, %s151
      %p165 = scmp.eq.s32.totalorder %s28, 1
      %p166 = por %p164, %p165
      %p168 = scmp.ne.s32.totalorder %s151, %s167
      %p169 = scmp.eq.s32.totalorder %s28, 0
      %p170 = por %p168, %p169
      %p171 = scmp.le.s32.totalorder 1, %s22
      %p172 = scmp.lt.s32.totalorder %s22, 3
      %p173 = pnand %p171, %p172
      %p174 = pneg %p173
      // Predicated region
      $region9: #{tpu_custom_call.1} parent=5 // pred_check
        _
      $region10: #{tpu_custom_call.1} parent=5 // pred_check_branch
        %176 = sbr.rel (%p173) target = $region12
      $region11: #{tpu_custom_call.1} parent=5 // pred_region
        %s177 = ssub.s32 %s22, 1
        // Predicated region
        $region13: #{tpu_custom_call.1} parent=11 // pred_check
          %p178 = pneg %p69
        $region14: #{tpu_custom_call.1} parent=11 // pred_check_branch
          %180 = sbr.rel (%p178) target = $region16
        $region15: #{tpu_custom_call.1} parent=11 // pred_region
          %182 = vsyncadd [#allocation6], 0
          %s183 = sshll.u32 %s1, 4
          %s184 = int_to_ptr.hbm [resolvable:$true] %s183
          %s185 = sshll.u32 [#allocation5], 4
          %s186 = int_to_ptr.vmem [resolvable:$true] %s185
          %191 = dma.hbm_to_vmem [thread:$0]  %s184, 12288, %s186, [#allocation6], 384, 384, 24
        $region16: #{tpu_custom_call.1} parent=11 // pred_fallthru
          _
        // Predicated region
        $region17: #{tpu_custom_call.1} parent=11 // pred_check
          %p192 = pneg %p90
        $region18: #{tpu_custom_call.1} parent=11 // pred_check_branch
          %194 = sbr.rel (%p192) target = $region20
        $region19: #{tpu_custom_call.1} parent=11 // pred_region
          %196 = vsyncadd [#allocation6], 0
          %s197 = sshll.u32 %s2, 4
          %s198 = int_to_ptr.hbm [resolvable:$true] %s197
          %s199 = sshll.u32 [#allocation7], 4
          %s200 = int_to_ptr.vmem [resolvable:$true] %s199
          %205 = dma.hbm_to_vmem [thread:$0]  %s198, 9216, %s200, [#allocation6], 64, 64, 4
        $region20: #{tpu_custom_call.1} parent=11 // pred_fallthru
          _
        // Predicated region
        $region21: #{tpu_custom_call.1} parent=11 // pred_check
          %p206 = pneg %p111
        $region22: #{tpu_custom_call.1} parent=11 // pred_check_branch
          %208 = sbr.rel (%p206) target = $region24
        $region23: #{tpu_custom_call.1} parent=11 // pred_region
          _
        $region24: #{tpu_custom_call.1} parent=11 // pred_fallthru
          _
      $region12: #{tpu_custom_call.1} parent=5 // pred_fallthru
        _
      %p209 = scmp.lt.s32.totalorder %s22, 2
      // Predicated region
      $region25: #{tpu_custom_call.1} parent=5 // pred_check
        %p210 = pneg %p209
      $region26: #{tpu_custom_call.1} parent=5 // pred_check_branch
        %212 = sbr.rel (%p210) target = $region28
      $region27: #{tpu_custom_call.1} parent=5 // pred_region
        // Predicated region
        $region29: #{tpu_custom_call.1} parent=27 // pred_check
          %p213 = pneg %p42
        $region30: #{tpu_custom_call.1} parent=27 // pred_check_branch
          %215 = sbr.rel (%p213) target = $region32
        $region31: #{tpu_custom_call.1} parent=27 // pred_region
          %s216 = sand.u32 %s32, 1
          %s217 = scalar_lea.sflag [#allocation3], %s216
          %s218 = sand.u32 %s32, 1
          %s219 = smul.addr %s218, 128
          %s220 = scalar_lea.vmem [#allocation2], %s219
          %s221 = smul.u32 32, %s22
          %223 = vsyncadd %s217, 0
          %s224 = smul.addr %s221, 4
          %s225 = scalar_lea.hbm %s0, %s224
          %s226 = sshll.u32 %s225, 4
          %s227 = int_to_ptr.hbm [resolvable:$true] %s226
          %s228 = sshll.u32 %s220, 4
          %s229 = int_to_ptr.vmem [resolvable:$true] %s228
          %234 = dma.hbm_to_vmem [thread:$0]  %s227, 2048, %s229, %s217, 64, 64, 4
        $region32: #{tpu_custom_call.1} parent=27 // pred_fallthru
          _
      $region28: #{tpu_custom_call.1} parent=5 // pred_fallthru
        _
      %p235 = scmp.le.s32.totalorder 1, %s22
      %p236 = scmp.lt.s32.totalorder %s22, 3
      %p237 = pnand %p235, %p236
      %p238 = pneg %p237
      // Predicated region
      $region33: #{tpu_custom_call.1} parent=5 // pred_check
        _
      $region34: #{tpu_custom_call.1} parent=5 // pred_check_branch
        %240 = sbr.rel (%p237) target = $region36
      $region35: #{tpu_custom_call.1} parent=5 // pred_region
        %s241 = ssub.s32 %s22, 1
        %s242 = sand.u32 %s35, 1
        %s243 = scalar_lea.sflag [#allocation3], %s242
        %s244 = sand.u32 %s35, 1
        %s245 = smul.addr %s244, 128
        %s246 = scalar_lea.vmem [#allocation2], %s245
        // Predicated region
        $region37: #{tpu_custom_call.1} parent=35 // pred_check
          %p247 = pneg %p48
        $region38: #{tpu_custom_call.1} parent=35 // pred_check_branch
          %249 = sbr.rel (%p247) target = $region40
        $region39: #{tpu_custom_call.1} parent=35 // pred_region
          %251 = dma.done %s243, 2048
        $region40: #{tpu_custom_call.1} parent=35 // pred_fallthru
          _
        // Predicated region
        $region41: #{tpu_custom_call.1} parent=35 // pred_check
          %p252 = pneg %p69
        $region42: #{tpu_custom_call.1} parent=35 // pred_check_branch
          %254 = sbr.rel (%p252) target = $region44
        $region43: #{tpu_custom_call.1} parent=35 // pred_region
          %256 = dma.done [#allocation6], 12288
        $region44: #{tpu_custom_call.1} parent=35 // pred_fallthru
          _
        // Predicated region
        $region45: #{tpu_custom_call.1} parent=35 // pred_check
          %p257 = pneg %p90
        $region46: #{tpu_custom_call.1} parent=35 // pred_check_branch
          %259 = sbr.rel (%p257) target = $region48
        $region47: #{tpu_custom_call.1} parent=35 // pred_region
          %261 = dma.done [#allocation6], 9216
        $region48: #{tpu_custom_call.1} parent=35 // pred_fallthru
          _
        %s262 = sand.u32 %s35, 1
        %s263 = scalar_lea.sflag [#allocation3], %s262
        %s264 = sand.u32 %s35, 1
        %s265 = smul.addr %s264, 128
        %s266 = scalar_lea.vmem [#allocation2], %s265
        %p267 = pneg %p48
        %p268 = pneg %p45
        %p269 = pneg %p69
        %p270 = pneg %p66
        %p271 = pneg %p90
        %p272 = pneg %p87
        %p273 = pneg %p111
        %p274 = pneg %p108
        %p275 = pneg %p137
        %p276 = pneg %p134
        %s277 = sand.u32 %s124, 1
        %s278 = scalar_lea.sflag [#allocation4], %s277
        %s279 = sand.u32 %s124, 1
        %s280 = smul.addr %s279, 128
        %s281 = scalar_lea.vmem [#allocation8], %s280
        %p282 = pneg %p163
        %p283 = pneg %p160
        %s284 = sand.u32 %s150, 1
        %s285 = scalar_lea.sflag [#allocation10], %s284
        %s286 = sand.u32 %s150, 1
        %s287 = smul.addr %s286, 8
        %s288 = scalar_lea.vmem [#allocation9], %s287
        %s289 = smul.u32 32, %s27
        %s290 = smul.u32 32, %s27
        %v291 = vld [vmem:[%s246] sm:$0xf]
        %v292 = vld [vmem:[%s246 + $0x4] sm:$0xf]
        %v293 = vld [vmem:[%s246 + $0x8] sm:$0xf]
        %v294 = vld [vmem:[%s246 + $0xc] sm:$0xf]
        %v295 = vld [vmem:[%s246 + $0x10] sm:$0xf]
        %v296 = vld [vmem:[%s246 + $0x14] sm:$0xf]
        %v297 = vld [vmem:[%s246 + $0x18] sm:$0xf]
        %v298 = vld [vmem:[%s246 + $0x1c] sm:$0xf]
        %v299 = vld [vmem:[%s246 + $0x20] sm:$0xf]
        %v300 = vld [vmem:[%s246 + $0x24] sm:$0xf]
        %v301 = vld [vmem:[%s246 + $0x28] sm:$0xf]
        %v302 = vld [vmem:[%s246 + $0x2c] sm:$0xf]
        %v303 = vld [vmem:[%s246 + $0x30] sm:$0xf]
        %v304 = vld [vmem:[%s246 + $0x34] sm:$0xf]
        %v305 = vld [vmem:[%s246 + $0x38] sm:$0xf]
        %v306 = vld [vmem:[%s246 + $0x3c] sm:$0xf]
        %v307 = vld [vmem:[%s246 + $0x40] sm:$0xf]
        %v308 = vld [vmem:[%s246 + $0x44] sm:$0xf]
        %v309 = vld [vmem:[%s246 + $0x48] sm:$0xf]
        %v310 = vld [vmem:[%s246 + $0x4c] sm:$0xf]
        %v311 = vld [vmem:[%s246 + $0x50] sm:$0xf]
        %v312 = vld [vmem:[%s246 + $0x54] sm:$0xf]
        %v313 = vld [vmem:[%s246 + $0x58] sm:$0xf]
        %v314 = vld [vmem:[%s246 + $0x5c] sm:$0xf]
        %v315 = vld [vmem:[%s246 + $0x60] sm:$0xf]
        %v316 = vld [vmem:[%s246 + $0x64] sm:$0xf]
        %v317 = vld [vmem:[%s246 + $0x68] sm:$0xf]
        %v318 = vld [vmem:[%s246 + $0x6c] sm:$0xf]
        %v319 = vld [vmem:[%s246 + $0x70] sm:$0xf]
        %v320 = vld [vmem:[%s246 + $0x74] sm:$0xf]
        %v321 = vld [vmem:[%s246 + $0x78] sm:$0xf]
        %v322 = vld [vmem:[%s246 + $0x7c] sm:$0xf]
        %v323 = vunpack.c.l.bf16 %v291
        %v324 = vunpack.c.l.bf16 %v292
        %v325 = vunpack.c.l.bf16 %v293
        %v326 = vunpack.c.l.bf16 %v294
        %v327 = vunpack.c.l.bf16 %v295
        %v328 = vunpack.c.l.bf16 %v296
        %v329 = vunpack.c.l.bf16 %v297
        %v330 = vunpack.c.l.bf16 %v298
        %v331 = vunpack.c.l.bf16 %v299
        %v332 = vunpack.c.l.bf16 %v300
        %v333 = vunpack.c.l.bf16 %v301
        %v334 = vunpack.c.l.bf16 %v302
        %v335 = vunpack.c.l.bf16 %v303
        %v336 = vunpack.c.l.bf16 %v304
        %v337 = vunpack.c.l.bf16 %v305
        %v338 = vunpack.c.l.bf16 %v306
        %v339 = vunpack.c.l.bf16 %v307
        %v340 = vunpack.c.l.bf16 %v308
        %v341 = vunpack.c.l.bf16 %v309
        %v342 = vunpack.c.l.bf16 %v310
        %v343 = vunpack.c.l.bf16 %v311
        %v344 = vunpack.c.l.bf16 %v312
        %v345 = vunpack.c.l.bf16 %v313
        %v346 = vunpack.c.l.bf16 %v314
        %v347 = vunpack.c.l.bf16 %v315
        %v348 = vunpack.c.l.bf16 %v316
        %v349 = vunpack.c.l.bf16 %v317
        %v350 = vunpack.c.l.bf16 %v318
        %v351 = vunpack.c.l.bf16 %v319
        %v352 = vunpack.c.l.bf16 %v320
        %v353 = vunpack.c.l.bf16 %v321
        %v354 = vunpack.c.l.bf16 %v322
        %v355 = vld [vmem:[#allocation5] sm:$0xff]
        %v356 = vld [vmem:[#allocation5 + $0x8] sm:$0xff]
        %v357 = vld [vmem:[#allocation5 + $0x10] sm:$0xff]
        %v358 = vld [vmem:[#allocation5 + $0x18] sm:$0xff]
        %v359 = vld [vmem:[#allocation5 + $0x20] sm:$0xff]
        %v360 = vld [vmem:[#allocation5 + $0x28] sm:$0xff]
        %v361 = vld [vmem:[#allocation5 + $0x30] sm:$0xff]
        %v362 = vld [vmem:[#allocation5 + $0x38] sm:$0xff]
        %v363 = vld [vmem:[#allocation5 + $0x40] sm:$0xff]
        %v364 = vld [vmem:[#allocation5 + $0x48] sm:$0xff]
        %v365 = vld [vmem:[#allocation5 + $0x50] sm:$0xff]
        %v366 = vld [vmem:[#allocation5 + $0x58] sm:$0xff]
        %v367 = vld [vmem:[#allocation5 + $0x60] sm:$0xff]
        %v368 = vld [vmem:[#allocation5 + $0x68] sm:$0xff]
        %v369 = vld [vmem:[#allocation5 + $0x70] sm:$0xff]
        %v370 = vld [vmem:[#allocation5 + $0x78] sm:$0xff]
        %v371 = vld [vmem:[#allocation5 + $0x80] sm:$0xff]
        %v372 = vld [vmem:[#allocation5 + $0x88] sm:$0xff]
        %v373 = vld [vmem:[#allocation5 + $0x90] sm:$0xff]
        %v374 = vld [vmem:[#allocation5 + $0x98] sm:$0xff]
        %v375 = vld [vmem:[#allocation5 + $0xa0] sm:$0xff]
        %v376 = vld [vmem:[#allocation5 + $0xa8] sm:$0xff]
        %v377 = vld [vmem:[#allocation5 + $0xb0] sm:$0xff]
        %v378 = vld [vmem:[#allocation5 + $0xb8] sm:$0xff]
        %v379 = vld [vmem:[#allocation5 + $0xc0] sm:$0xff]
        %v380 = vld [vmem:[#allocation5 + $0xc8] sm:$0xff]
        %v381 = vld [vmem:[#allocation5 + $0xd0] sm:$0xff]
        %v382 = vld [vmem:[#allocation5 + $0xd8] sm:$0xff]
        %v383 = vld [vmem:[#allocation5 + $0xe0] sm:$0xff]
        %v384 = vld [vmem:[#allocation5 + $0xe8] sm:$0xff]
        %v385 = vld [vmem:[#allocation5 + $0xf0] sm:$0xff]
        %v386 = vld [vmem:[#allocation5 + $0xf8] sm:$0xff]
        %v387 = vld [vmem:[#allocation5 + $0x100] sm:$0xff]
        %v388 = vld [vmem:[#allocation5 + $0x108] sm:$0xff]
        %v389 = vld [vmem:[#allocation5 + $0x110] sm:$0xff]
        %v390 = vld [vmem:[#allocation5 + $0x118] sm:$0xff]
        %v391 = vld [vmem:[#allocation5 + $0x120] sm:$0xff]
        %v392 = vld [vmem:[#allocation5 + $0x128] sm:$0xff]
        %v393 = vld [vmem:[#allocation5 + $0x130] sm:$0xff]
        %v394 = vld [vmem:[#allocation5 + $0x138] sm:$0xff]
        %v395 = vld [vmem:[#allocation5 + $0x140] sm:$0xff]
        %v396 = vld [vmem:[#allocation5 + $0x148] sm:$0xff]
        %v397 = vld [vmem:[#allocation5 + $0x150] sm:$0xff]
        %v398 = vld [vmem:[#allocation5 + $0x158] sm:$0xff]
        %v399 = vld [vmem:[#allocation5 + $0x160] sm:$0xff]
        %v400 = vld [vmem:[#allocation5 + $0x168] sm:$0xff]
        %v401 = vld [vmem:[#allocation5 + $0x170] sm:$0xff]
        %v402 = vld [vmem:[#allocation5 + $0x178] sm:$0xff]
        %v403 = vld [vmem:[#allocation5 + $0x180] sm:$0xff]
        %v404 = vld [vmem:[#allocation5 + $0x188] sm:$0xff]
        %v405 = vld [vmem:[#allocation5 + $0x190] sm:$0xff]
        %v406 = vld [vmem:[#allocation5 + $0x198] sm:$0xff]
        %v407 = vld [vmem:[#allocation5 + $0x1a0] sm:$0xff]
        %v408 = vld [vmem:[#allocation5 + $0x1a8] sm:$0xff]
        %v409 = vld [vmem:[#allocation5 + $0x1b0] sm:$0xff]
        %v410 = vld [vmem:[#allocation5 + $0x1b8] sm:$0xff]
        %v411 = vld [vmem:[#allocation5 + $0x1c0] sm:$0xff]
        %v412 = vld [vmem:[#allocation5 + $0x1c8] sm:$0xff]
        %v413 = vld [vmem:[#allocation5 + $0x1d0] sm:$0xff]
        %v414 = vld [vmem:[#allocation5 + $0x1d8] sm:$0xff]
        %v415 = vld [vmem:[#allocation5 + $0x1e0] sm:$0xff]
        %v416 = vld [vmem:[#allocation5 + $0x1e8] sm:$0xff]
        %v417 = vld [vmem:[#allocation5 + $0x1f0] sm:$0xff]
        %v418 = vld [vmem:[#allocation5 + $0x1f8] sm:$0xff]
        %v419 = vld [vmem:[#allocation5 + $0x200] sm:$0xff]
        %v420 = vld [vmem:[#allocation5 + $0x208] sm:$0xff]
        %v421 = vld [vmem:[#allocation5 + $0x210] sm:$0xff]
        %v422 = vld [vmem:[#allocation5 + $0x218] sm:$0xff]
        %v423 = vld [vmem:[#allocation5 + $0x220] sm:$0xff]
        %v424 = vld [vmem:[#allocation5 + $0x228] sm:$0xff]
        %v425 = vld [vmem:[#allocation5 + $0x230] sm:$0xff]
        %v426 = vld [vmem:[#allocation5 + $0x238] sm:$0xff]
        %v427 = vld [vmem:[#allocation5 + $0x240] sm:$0xff]
        %v428 = vld [vmem:[#allocation5 + $0x248] sm:$0xff]
        %v429 = vld [vmem:[#allocation5 + $0x250] sm:$0xff]
        %v430 = vld [vmem:[#allocation5 + $0x258] sm:$0xff]
        %v431 = vld [vmem:[#allocation5 + $0x260] sm:$0xff]
        %v432 = vld [vmem:[#allocation5 + $0x268] sm:$0xff]
        %v433 = vld [vmem:[#allocation5 + $0x270] sm:$0xff]
        %v434 = vld [vmem:[#allocation5 + $0x278] sm:$0xff]
        %v435 = vld [vmem:[#allocation5 + $0x280] sm:$0xff]
        %v436 = vld [vmem:[#allocation5 + $0x288] sm:$0xff]
        %v437 = vld [vmem:[#allocation5 + $0x290] sm:$0xff]
        %v438 = vld [vmem:[#allocation5 + $0x298] sm:$0xff]
        %v439 = vld [vmem:[#allocation5 + $0x2a0] sm:$0xff]
        %v440 = vld [vmem:[#allocation5 + $0x2a8] sm:$0xff]
        %v441 = vld [vmem:[#allocation5 + $0x2b0] sm:$0xff]
        %v442 = vld [vmem:[#allocation5 + $0x2b8] sm:$0xff]
        %v443 = vld [vmem:[#allocation5 + $0x2c0] sm:$0xff]
        %v444 = vld [vmem:[#allocation5 + $0x2c8] sm:$0xff]
        %v445 = vld [vmem:[#allocation5 + $0x2d0] sm:$0xff]
        %v446 = vld [vmem:[#allocation5 + $0x2d8] sm:$0xff]
        %v447 = vld [vmem:[#allocation5 + $0x2e0] sm:$0xff]
        %v448 = vld [vmem:[#allocation5 + $0x2e8] sm:$0xff]
        %v449 = vld [vmem:[#allocation5 + $0x2f0] sm:$0xff]
        %v450 = vld [vmem:[#allocation5 + $0x2f8] sm:$0xff]
        %v451 = vrot.slane %v323, 7
        %v452 = vrot.slane %v324, 7
        %v453 = vrot.slane %v325, 7
        %v454 = vrot.slane %v326, 7
        %v455 = vrot.slane %v327, 7
        %v456 = vrot.slane %v328, 7
        %v457 = vrot.slane %v329, 7
        %v458 = vrot.slane %v330, 7
        %v459 = vrot.slane %v331, 7
        %v460 = vrot.slane %v332, 7
        %v461 = vrot.slane %v333, 7
        %v462 = vrot.slane %v334, 7
        %v463 = vrot.slane %v335, 7
        %v464 = vrot.slane %v336, 7
        %v465 = vrot.slane %v337, 7
        %v466 = vrot.slane %v338, 7
        %v467 = vrot.slane %v339, 7
        %v468 = vrot.slane %v340, 7
        %v469 = vrot.slane %v341, 7
        %v470 = vrot.slane %v342, 7
        %v471 = vrot.slane %v343, 7
        %v472 = vrot.slane %v344, 7
        %v473 = vrot.slane %v345, 7
        %v474 = vrot.slane %v346, 7
        %v475 = vrot.slane %v347, 7
        %v476 = vrot.slane %v348, 7
        %v477 = vrot.slane %v349, 7
        %v478 = vrot.slane %v350, 7
        %v479 = vrot.slane %v351, 7
        %v480 = vrot.slane %v352, 7
        %v481 = vrot.slane %v353, 7
        %v482 = vrot.slane %v354, 7
        %v483 = vlaneseq
        %v484 = vshrl.u32 %v483, 7
        %vm485 = vcmp.lt.s32.totalorder %v484, 1
        %v486 = vsel %vm485, %v481, %v482
        %v487 = vsel %vm485, %v480, %v481
        %v488 = vsel %vm485, %v479, %v480
        %v489 = vsel %vm485, %v478, %v479
        %v490 = vsel %vm485, %v477, %v478
        %v491 = vsel %vm485, %v476, %v477
        %v492 = vsel %vm485, %v475, %v476
        %v493 = vsel %vm485, %v474, %v475
        %v494 = vsel %vm485, %v473, %v474
        %v495 = vsel %vm485, %v472, %v473
        %v496 = vsel %vm485, %v471, %v472
        %v497 = vsel %vm485, %v470, %v471
        %v498 = vsel %vm485, %v469, %v470
        %v499 = vsel %vm485, %v468, %v469
        %v500 = vsel %vm485, %v467, %v468
        %v501 = vsel %vm485, %v466, %v467
        %v502 = vsel %vm485, %v465, %v466
        %v503 = vsel %vm485, %v464, %v465
        %v504 = vsel %vm485, %v463, %v464
        %v505 = vsel %vm485, %v462, %v463
        %v506 = vsel %vm485, %v461, %v462
        %v507 = vsel %vm485, %v460, %v461
        %v508 = vsel %vm485, %v459, %v460
        %v509 = vsel %vm485, %v458, %v459
        %v510 = vsel %vm485, %v457, %v458
        %v511 = vsel %vm485, %v456, %v457
        %v512 = vsel %vm485, %v455, %v456
        %v513 = vsel %vm485, %v454, %v455
        %v514 = vsel %vm485, %v453, %v454
        %v515 = vsel %vm485, %v452, %v453
        %v516 = vsel %vm485, %v451, %v452
        %v517 = vsel %vm485, %v482, %v451
        %v518 = vrot.slane %v323, 1
        %v519 = vrot.slane %v324, 1
        %v520 = vrot.slane %v325, 1
        %v521 = vrot.slane %v326, 1
        %v522 = vrot.slane %v327, 1
        %v523 = vrot.slane %v328, 1
        %v524 = vrot.slane %v329, 1
        %v525 = vrot.slane %v330, 1
        %v526 = vrot.slane %v331, 1
        %v527 = vrot.slane %v332, 1
        %v528 = vrot.slane %v333, 1
        %v529 = vrot.slane %v334, 1
        %v530 = vrot.slane %v335, 1
        %v531 = vrot.slane %v336, 1
        %v532 = vrot.slane %v337, 1
        %v533 = vrot.slane %v338, 1
        %v534 = vrot.slane %v339, 1
        %v535 = vrot.slane %v340, 1
        %v536 = vrot.slane %v341, 1
        %v537 = vrot.slane %v342, 1
        %v538 = vrot.slane %v343, 1
        %v539 = vrot.slane %v344, 1
        %v540 = vrot.slane %v345, 1
        %v541 = vrot.slane %v346, 1
        %v542 = vrot.slane %v347, 1
        %v543 = vrot.slane %v348, 1
        %v544 = vrot.slane %v349, 1
        %v545 = vrot.slane %v350, 1
        %v546 = vrot.slane %v351, 1
        %v547 = vrot.slane %v352, 1
        %v548 = vrot.slane %v353, 1
        %v549 = vrot.slane %v354, 1
        %vm550 = vcmp.lt.s32.totalorder %v484, 7
        %v551 = vsel %vm550, %v548, %v549
        %v552 = vsel %vm550, %v547, %v548
        %v553 = vsel %vm550, %v546, %v547
        %v554 = vsel %vm550, %v545, %v546
        %v555 = vsel %vm550, %v544, %v545
        %v556 = vsel %vm550, %v543, %v544
        %v557 = vsel %vm550, %v542, %v543
        %v558 = vsel %vm550, %v541, %v542
        %v559 = vsel %vm550, %v540, %v541
        %v560 = vsel %vm550, %v539, %v540
        %v561 = vsel %vm550, %v538, %v539
        %v562 = vsel %vm550, %v537, %v538
        %v563 = vsel %vm550, %v536, %v537
        %v564 = vsel %vm550, %v535, %v536
        %v565 = vsel %vm550, %v534, %v535
        %v566 = vsel %vm550, %v533, %v534
        %v567 = vsel %vm550, %v532, %v533
        %v568 = vsel %vm550, %v531, %v532
        %v569 = vsel %vm550, %v530, %v531
        %v570 = vsel %vm550, %v529, %v530
        %v571 = vsel %vm550, %v528, %v529
        %v572 = vsel %vm550, %v527, %v528
        %v573 = vsel %vm550, %v526, %v527
        %v574 = vsel %vm550, %v525, %v526
        %v575 = vsel %vm550, %v524, %v525
        %v576 = vsel %vm550, %v523, %v524
        %v577 = vsel %vm550, %v522, %v523
        %v578 = vsel %vm550, %v521, %v522
        %v579 = vsel %vm550, %v520, %v521
        %v580 = vsel %vm550, %v519, %v520
        %v581 = vsel %vm550, %v518, %v519
        %v582 = vsel %vm550, %v549, %v518
        %v583 = vmul.f32 %v517, %v355
        %v584 = vmul.f32 %v323, %v356
        %v585 = vmul.f32 %v581, %v357
        %v586 = vmul.f32 %v516, %v358
        %v587 = vmul.f32 %v324, %v359
        %v588 = vmul.f32 %v580, %v360
        %v589 = vmul.f32 %v515, %v361
        %v590 = vmul.f32 %v325, %v362
        %v591 = vmul.f32 %v579, %v363
        %v592 = vmul.f32 %v514, %v364
        %v593 = vmul.f32 %v326, %v365
        %v594 = vmul.f32 %v578, %v366
        %v595 = vmul.f32 %v513, %v367
        %v596 = vmul.f32 %v327, %v368
        %v597 = vmul.f32 %v577, %v369
        %v598 = vmul.f32 %v512, %v370
        %v599 = vmul.f32 %v328, %v371
        %v600 = vmul.f32 %v576, %v372
        %v601 = vmul.f32 %v511, %v373
        %v602 = vmul.f32 %v329, %v374
        %v603 = vmul.f32 %v575, %v375
        %v604 = vmul.f32 %v510, %v376
        %v605 = vmul.f32 %v330, %v377
        %v606 = vmul.f32 %v574, %v378
        %v607 = vmul.f32 %v509, %v379
        %v608 = vmul.f32 %v331, %v380
        %v609 = vmul.f32 %v573, %v381
        %v610 = vmul.f32 %v508, %v382
        %v611 = vmul.f32 %v332, %v383
        %v612 = vmul.f32 %v572, %v384
        %v613 = vmul.f32 %v507, %v385
        %v614 = vmul.f32 %v333, %v386
        %v615 = vmul.f32 %v571, %v387
        %v616 = vmul.f32 %v506, %v388
        %v617 = vmul.f32 %v334, %v389
        %v618 = vmul.f32 %v570, %v390
        %v619 = vmul.f32 %v505, %v391
        %v620 = vmul.f32 %v335, %v392
        %v621 = vmul.f32 %v569, %v393
        %v622 = vmul.f32 %v504, %v394
        %v623 = vmul.f32 %v336, %v395
        %v624 = vmul.f32 %v568, %v396
        %v625 = vmul.f32 %v503, %v397
        %v626 = vmul.f32 %v337, %v398
        %v627 = vmul.f32 %v567, %v399
        %v628 = vmul.f32 %v502, %v400
        %v629 = vmul.f32 %v338, %v401
        %v630 = vmul.f32 %v566, %v402
        %v631 = vmul.f32 %v501, %v403
        %v632 = vmul.f32 %v339, %v404
        %v633 = vmul.f32 %v565, %v405
        %v634 = vmul.f32 %v500, %v406
        %v635 = vmul.f32 %v340, %v407
        %v636 = vmul.f32 %v564, %v408
        %v637 = vmul.f32 %v499, %v409
        %v638 = vmul.f32 %v341, %v410
        %v639 = vmul.f32 %v563, %v411
        %v640 = vmul.f32 %v498, %v412
        %v641 = vmul.f32 %v342, %v413
        %v642 = vmul.f32 %v562, %v414
        %v643 = vmul.f32 %v497, %v415
        %v644 = vmul.f32 %v343, %v416
        %v645 = vmul.f32 %v561, %v417
        %v646 = vmul.f32 %v496, %v418
        %v647 = vmul.f32 %v344, %v419
        %v648 = vmul.f32 %v560, %v420
        %v649 = vmul.f32 %v495, %v421
        %v650 = vmul.f32 %v345, %v422
        %v651 = vmul.f32 %v559, %v423
        %v652 = vmul.f32 %v494, %v424
        %v653 = vmul.f32 %v346, %v425
        %v654 = vmul.f32 %v558, %v426
        %v655 = vmul.f32 %v493, %v427
        %v656 = vmul.f32 %v347, %v428
        %v657 = vmul.f32 %v557, %v429
        %v658 = vmul.f32 %v492, %v430
        %v659 = vmul.f32 %v348, %v431
        %v660 = vmul.f32 %v556, %v432
        %v661 = vmul.f32 %v491, %v433
        %v662 = vmul.f32 %v349, %v434
        %v663 = vmul.f32 %v555, %v435
        %v664 = vmul.f32 %v490, %v436
        %v665 = vmul.f32 %v350, %v437
        %v666 = vmul.f32 %v554, %v438
        %v667 = vmul.f32 %v489, %v439
        %v668 = vmul.f32 %v351, %v440
        %v669 = vmul.f32 %v553, %v441
        %v670 = vmul.f32 %v488, %v442
        %v671 = vmul.f32 %v352, %v443
        %v672 = vmul.f32 %v552, %v444
        %v673 = vmul.f32 %v487, %v445
        %v674 = vmul.f32 %v353, %v446
        %v675 = vmul.f32 %v551, %v447
        %v676 = vmul.f32 %v486, %v448
        %v677 = vmul.f32 %v354, %v449
        %v678 = vmul.f32 %v582, %v450
        %v679 = vadd.s32 %v484, 8
        %v680 = vadd.s32 %v484, 16
        %v681 = vadd.s32 %v484, 24
        %v682 = vadd.s32 %v484, 32
        %v683 = vadd.s32 %v484, 40
        %v684 = vadd.s32 %v484, 48
        %v685 = vadd.s32 %v484, 56
        %v686 = vadd.s32 %v484, 64
        %v687 = vadd.s32 %v484, 72
        %v688 = vadd.s32 %v484, 80
        %v689 = vadd.s32 %v484, 88
        %v690 = vadd.s32 %v484, 96
        %v691 = vadd.s32 %v484, 104
        %v692 = vadd.s32 %v484, 112
        %v693 = vadd.s32 %v484, 120
        %v694 = vadd.s32 %v484, 128
        %v695 = vadd.s32 %v484, 136
        %v696 = vadd.s32 %v484, 144
        %v697 = vadd.s32 %v484, 152
        %v698 = vadd.s32 %v484, 160
        %v699 = vadd.s32 %v484, 168
        %v700 = vadd.s32 %v484, 176
        %v701 = vadd.s32 %v484, 184
        %v702 = vadd.s32 %v484, 192
        %v703 = vadd.s32 %v484, 200
        %v704 = vadd.s32 %v484, 208
        %v705 = vadd.s32 %v484, 216
        %v706 = vadd.s32 %v484, 224
        %v707 = vadd.s32 %v484, 232
        %v708 = vadd.s32 %v484, 240
        %v709 = vadd.s32 %v484, 248
        %vm710 = vcmp.ge.s32.totalorder %v484, 16
        %vm711 = vcmp.ge.s32.totalorder %v679, 16
        %vm712 = vcmp.ge.s32.totalorder %v680, 16
        %vm713 = vcmp.ge.s32.totalorder %v681, 16
        %vm714 = vcmp.ge.s32.totalorder %v682, 16
        %vm715 = vcmp.ge.s32.totalorder %v683, 16
        %vm716 = vcmp.ge.s32.totalorder %v684, 16
        %vm717 = vcmp.ge.s32.totalorder %v685, 16
        %vm718 = vcmp.ge.s32.totalorder %v686, 16
        %vm719 = vcmp.ge.s32.totalorder %v687, 16
        %vm720 = vcmp.ge.s32.totalorder %v688, 16
        %vm721 = vcmp.ge.s32.totalorder %v689, 16
        %vm722 = vcmp.ge.s32.totalorder %v690, 16
        %vm723 = vcmp.ge.s32.totalorder %v691, 16
        %vm724 = vcmp.ge.s32.totalorder %v692, 16
        %vm725 = vcmp.ge.s32.totalorder %v693, 16
        %vm726 = vcmp.ge.s32.totalorder %v694, 16
        %vm727 = vcmp.ge.s32.totalorder %v695, 16
        %vm728 = vcmp.ge.s32.totalorder %v696, 16
        %vm729 = vcmp.ge.s32.totalorder %v697, 16
        %vm730 = vcmp.ge.s32.totalorder %v698, 16
        %vm731 = vcmp.ge.s32.totalorder %v699, 16
        %vm732 = vcmp.ge.s32.totalorder %v700, 16
        %vm733 = vcmp.ge.s32.totalorder %v701, 16
        %vm734 = vcmp.ge.s32.totalorder %v702, 16
        %vm735 = vcmp.ge.s32.totalorder %v703, 16
        %vm736 = vcmp.ge.s32.totalorder %v704, 16
        %vm737 = vcmp.ge.s32.totalorder %v705, 16
        %vm738 = vcmp.ge.s32.totalorder %v706, 16
        %vm739 = vcmp.ge.s32.totalorder %v707, 16
        %vm740 = vcmp.ge.s32.totalorder %v708, 16
        %vm741 = vcmp.ge.s32.totalorder %v709, 16
        %v742 = vsel %vm710, %v673, 0.0
        %v743 = vsel %vm710, %v674, 0.0
        %v744 = vsel %vm710, %v675, 0.0
        %v745 = vsel %vm711, %v676, 0.0
        %v746 = vsel %vm711, %v677, 0.0
        %v747 = vsel %vm711, %v678, 0.0
        %v748 = vsel %vm712, %v583, 0.0
        %v749 = vsel %vm712, %v584, 0.0
        %v750 = vsel %vm712, %v585, 0.0
        %v751 = vsel %vm713, %v586, 0.0
        %v752 = vsel %vm713, %v587, 0.0
        %v753 = vsel %vm713, %v588, 0.0
        %v754 = vsel %vm714, %v589, 0.0
        %v755 = vsel %vm714, %v590, 0.0
        %v756 = vsel %vm714, %v591, 0.0
        %v757 = vsel %vm715, %v592, 0.0
        %v758 = vsel %vm715, %v593, 0.0
        %v759 = vsel %vm715, %v594, 0.0
        %v760 = vsel %vm716, %v595, 0.0
        %v761 = vsel %vm716, %v596, 0.0
        %v762 = vsel %vm716, %v597, 0.0
        %v763 = vsel %vm717, %v598, 0.0
        %v764 = vsel %vm717, %v599, 0.0
        %v765 = vsel %vm717, %v600, 0.0
        %v766 = vsel %vm718, %v601, 0.0
        %v767 = vsel %vm718, %v602, 0.0
        %v768 = vsel %vm718, %v603, 0.0
        %v769 = vsel %vm719, %v604, 0.0
        %v770 = vsel %vm719, %v605, 0.0
        %v771 = vsel %vm719, %v606, 0.0
        %v772 = vsel %vm720, %v607, 0.0
        %v773 = vsel %vm720, %v608, 0.0
        %v774 = vsel %vm720, %v609, 0.0
        %v775 = vsel %vm721, %v610, 0.0
        %v776 = vsel %vm721, %v611, 0.0
        %v777 = vsel %vm721, %v612, 0.0
        %v778 = vsel %vm722, %v613, 0.0
        %v779 = vsel %vm722, %v614, 0.0
        %v780 = vsel %vm722, %v615, 0.0
        %v781 = vsel %vm723, %v616, 0.0
        %v782 = vsel %vm723, %v617, 0.0
        %v783 = vsel %vm723, %v618, 0.0
        %v784 = vsel %vm724, %v619, 0.0
        %v785 = vsel %vm724, %v620, 0.0
        %v786 = vsel %vm724, %v621, 0.0
        %v787 = vsel %vm725, %v622, 0.0
        %v788 = vsel %vm725, %v623, 0.0
        %v789 = vsel %vm725, %v624, 0.0
        %v790 = vsel %vm726, %v625, 0.0
        %v791 = vsel %vm726, %v626, 0.0
        %v792 = vsel %vm726, %v627, 0.0
        %v793 = vsel %vm727, %v628, 0.0
        %v794 = vsel %vm727, %v629, 0.0
        %v795 = vsel %vm727, %v630, 0.0
        %v796 = vsel %vm728, %v631, 0.0
        %v797 = vsel %vm728, %v632, 0.0
        %v798 = vsel %vm728, %v633, 0.0
        %v799 = vsel %vm729, %v634, 0.0
        %v800 = vsel %vm729, %v635, 0.0
        %v801 = vsel %vm729, %v636, 0.0
        %v802 = vsel %vm730, %v637, 0.0
        %v803 = vsel %vm730, %v638, 0.0
        %v804 = vsel %vm730, %v639, 0.0
        %v805 = vsel %vm731, %v640, 0.0
        %v806 = vsel %vm731, %v641, 0.0
        %v807 = vsel %vm731, %v642, 0.0
        %v808 = vsel %vm732, %v643, 0.0
        %v809 = vsel %vm732, %v644, 0.0
        %v810 = vsel %vm732, %v645, 0.0
        %v811 = vsel %vm733, %v646, 0.0
        %v812 = vsel %vm733, %v647, 0.0
        %v813 = vsel %vm733, %v648, 0.0
        %v814 = vsel %vm734, %v649, 0.0
        %v815 = vsel %vm734, %v650, 0.0
        %v816 = vsel %vm734, %v651, 0.0
        %v817 = vsel %vm735, %v652, 0.0
        %v818 = vsel %vm735, %v653, 0.0
        %v819 = vsel %vm735, %v654, 0.0
        %v820 = vsel %vm736, %v655, 0.0
        %v821 = vsel %vm736, %v656, 0.0
        %v822 = vsel %vm736, %v657, 0.0
        %v823 = vsel %vm737, %v658, 0.0
        %v824 = vsel %vm737, %v659, 0.0
        %v825 = vsel %vm737, %v660, 0.0
        %v826 = vsel %vm738, %v661, 0.0
        %v827 = vsel %vm738, %v662, 0.0
        %v828 = vsel %vm738, %v663, 0.0
        %v829 = vsel %vm739, %v664, 0.0
        %v830 = vsel %vm739, %v665, 0.0
        %v831 = vsel %vm739, %v666, 0.0
        %v832 = vsel %vm740, %v667, 0.0
        %v833 = vsel %vm740, %v668, 0.0
        %v834 = vsel %vm740, %v669, 0.0
        %v835 = vsel %vm741, %v670, 0.0
        %v836 = vsel %vm741, %v671, 0.0
        %v837 = vsel %vm741, %v672, 0.0
        %vm838 = vcmp.lt.s32.totalorder %v484, 240
        %vm839 = vcmp.lt.s32.totalorder %v679, 240
        %vm840 = vcmp.lt.s32.totalorder %v680, 240
        %vm841 = vcmp.lt.s32.totalorder %v681, 240
        %vm842 = vcmp.lt.s32.totalorder %v682, 240
        %vm843 = vcmp.lt.s32.totalorder %v683, 240
        %vm844 = vcmp.lt.s32.totalorder %v684, 240
        %vm845 = vcmp.lt.s32.totalorder %v685, 240
        %vm846 = vcmp.lt.s32.totalorder %v686, 240
        %vm847 = vcmp.lt.s32.totalorder %v687, 240
        %vm848 = vcmp.lt.s32.totalorder %v688, 240
        %vm849 = vcmp.lt.s32.totalorder %v689, 240
        %vm850 = vcmp.lt.s32.totalorder %v690, 240
        %vm851 = vcmp.lt.s32.totalorder %v691, 240
        %vm852 = vcmp.lt.s32.totalorder %v692, 240
        %vm853 = vcmp.lt.s32.totalorder %v693, 240
        %vm854 = vcmp.lt.s32.totalorder %v694, 240
        %vm855 = vcmp.lt.s32.totalorder %v695, 240
        %vm856 = vcmp.lt.s32.totalorder %v696, 240
        %vm857 = vcmp.lt.s32.totalorder %v697, 240
        %vm858 = vcmp.lt.s32.totalorder %v698, 240
        %vm859 = vcmp.lt.s32.totalorder %v699, 240
        %vm860 = vcmp.lt.s32.totalorder %v700, 240
        %vm861 = vcmp.lt.s32.totalorder %v701, 240
        %vm862 = vcmp.lt.s32.totalorder %v702, 240
        %vm863 = vcmp.lt.s32.totalorder %v703, 240
        %vm864 = vcmp.lt.s32.totalorder %v704, 240
        %vm865 = vcmp.lt.s32.totalorder %v705, 240
        %vm866 = vcmp.lt.s32.totalorder %v706, 240
        %vm867 = vcmp.lt.s32.totalorder %v707, 240
        %vm868 = vcmp.lt.s32.totalorder %v708, 240
        %vm869 = vcmp.lt.s32.totalorder %v709, 240
        %v870 = vsel %vm838, %v589, 0.0
        %v871 = vsel %vm838, %v590, 0.0
        %v872 = vsel %vm838, %v591, 0.0
        %v873 = vsel %vm839, %v592, 0.0
        %v874 = vsel %vm839, %v593, 0.0
        %v875 = vsel %vm839, %v594, 0.0
        %v876 = vsel %vm840, %v595, 0.0
        %v877 = vsel %vm840, %v596, 0.0
        %v878 = vsel %vm840, %v597, 0.0
        %v879 = vsel %vm841, %v598, 0.0
        %v880 = vsel %vm841, %v599, 0.0
        %v881 = vsel %vm841, %v600, 0.0
        %v882 = vsel %vm842, %v601, 0.0
        %v883 = vsel %vm842, %v602, 0.0
        %v884 = vsel %vm842, %v603, 0.0
        %v885 = vsel %vm843, %v604, 0.0
        %v886 = vsel %vm843, %v605, 0.0
        %v887 = vsel %vm843, %v606, 0.0
        %v888 = vsel %vm844, %v607, 0.0
        %v889 = vsel %vm844, %v608, 0.0
        %v890 = vsel %vm844, %v609, 0.0
        %v891 = vsel %vm845, %v610, 0.0
        %v892 = vsel %vm845, %v611, 0.0
        %v893 = vsel %vm845, %v612, 0.0
        %v894 = vsel %vm846, %v613, 0.0
        %v895 = vsel %vm846, %v614, 0.0
        %v896 = vsel %vm846, %v615, 0.0
        %v897 = vsel %vm847, %v616, 0.0
        %v898 = vsel %vm847, %v617, 0.0
        %v899 = vsel %vm847, %v618, 0.0
        %v900 = vsel %vm848, %v619, 0.0
        %v901 = vsel %vm848, %v620, 0.0
        %v902 = vsel %vm848, %v621, 0.0
        %v903 = vsel %vm849, %v622, 0.0
        %v904 = vsel %vm849, %v623, 0.0
        %v905 = vsel %vm849, %v624, 0.0
        %v906 = vsel %vm850, %v625, 0.0
        %v907 = vsel %vm850, %v626, 0.0
        %v908 = vsel %vm850, %v627, 0.0
        %v909 = vsel %vm851, %v628, 0.0
        %v910 = vsel %vm851, %v629, 0.0
        %v911 = vsel %vm851, %v630, 0.0
        %v912 = vsel %vm852, %v631, 0.0
        %v913 = vsel %vm852, %v632, 0.0
        %v914 = vsel %vm852, %v633, 0.0
        %v915 = vsel %vm853, %v634, 0.0
        %v916 = vsel %vm853, %v635, 0.0
        %v917 = vsel %vm853, %v636, 0.0
        %v918 = vsel %vm854, %v637, 0.0
        %v919 = vsel %vm854, %v638, 0.0
        %v920 = vsel %vm854, %v639, 0.0
        %v921 = vsel %vm855, %v640, 0.0
        %v922 = vsel %vm855, %v641, 0.0
        %v923 = vsel %vm855, %v642, 0.0
        %v924 = vsel %vm856, %v643, 0.0
        %v925 = vsel %vm856, %v644, 0.0
        %v926 = vsel %vm856, %v645, 0.0
        %v927 = vsel %vm857, %v646, 0.0
        %v928 = vsel %vm857, %v647, 0.0
        %v929 = vsel %vm857, %v648, 0.0
        %v930 = vsel %vm858, %v649, 0.0
        %v931 = vsel %vm858, %v650, 0.0
        %v932 = vsel %vm858, %v651, 0.0
        %v933 = vsel %vm859, %v652, 0.0
        %v934 = vsel %vm859, %v653, 0.0
        %v935 = vsel %vm859, %v654, 0.0
        %v936 = vsel %vm860, %v655, 0.0
        %v937 = vsel %vm860, %v656, 0.0
        %v938 = vsel %vm860, %v657, 0.0
        %v939 = vsel %vm861, %v658, 0.0
        %v940 = vsel %vm861, %v659, 0.0
        %v941 = vsel %vm861, %v660, 0.0
        %v942 = vsel %vm862, %v661, 0.0
        %v943 = vsel %vm862, %v662, 0.0
        %v944 = vsel %vm862, %v663, 0.0
        %v945 = vsel %vm863, %v664, 0.0
        %v946 = vsel %vm863, %v665, 0.0
        %v947 = vsel %vm863, %v666, 0.0
        %v948 = vsel %vm864, %v667, 0.0
        %v949 = vsel %vm864, %v668, 0.0
        %v950 = vsel %vm864, %v669, 0.0
        %v951 = vsel %vm865, %v670, 0.0
        %v952 = vsel %vm865, %v671, 0.0
        %v953 = vsel %vm865, %v672, 0.0
        %v954 = vsel %vm866, %v673, 0.0
        %v955 = vsel %vm866, %v674, 0.0
        %v956 = vsel %vm866, %v675, 0.0
        %v957 = vsel %vm867, %v676, 0.0
        %v958 = vsel %vm867, %v677, 0.0
        %v959 = vsel %vm867, %v678, 0.0
        %v960 = vsel %vm868, %v583, 0.0
        %v961 = vsel %vm868, %v584, 0.0
        %v962 = vsel %vm868, %v585, 0.0
        %v963 = vsel %vm869, %v586, 0.0
        %v964 = vsel %vm869, %v587, 0.0
        %v965 = vsel %vm869, %v588, 0.0
        %v966 = vpack.c.bf16 %v745, %v742
        %v967 = vpack.c.bf16 %v746, %v743
        %v968 = vpack.c.bf16 %v747, %v744
        %v969 = vpack.c.bf16 %v586, %v583
        %v970 = vpack.c.bf16 %v587, %v584
        %v971 = vpack.c.bf16 %v588, %v585
        %v972 = vpack.c.bf16 %v873, %v870
        %v973 = vpack.c.bf16 %v874, %v871
        %v974 = vpack.c.bf16 %v875, %v872
        %v975 = vpack.c.bf16 %v751, %v748
        %v976 = vpack.c.bf16 %v752, %v749
        %v977 = vpack.c.bf16 %v753, %v750
        %v978 = vpack.c.bf16 %v592, %v589
        %v979 = vpack.c.bf16 %v593, %v590
        %v980 = vpack.c.bf16 %v594, %v591
        %v981 = vpack.c.bf16 %v879, %v876
        %v982 = vpack.c.bf16 %v880, %v877
        %v983 = vpack.c.bf16 %v881, %v878
        %v984 = vpack.c.bf16 %v757, %v754
        %v985 = vpack.c.bf16 %v758, %v755
        %v986 = vpack.c.bf16 %v759, %v756
        %v987 = vpack.c.bf16 %v598, %v595
        %v988 = vpack.c.bf16 %v599, %v596
        %v989 = vpack.c.bf16 %v600, %v597
        %v990 = vpack.c.bf16 %v885, %v882
        %v991 = vpack.c.bf16 %v886, %v883
        %v992 = vpack.c.bf16 %v887, %v884
        %v993 = vpack.c.bf16 %v763, %v760
        %v994 = vpack.c.bf16 %v764, %v761
        %v995 = vpack.c.bf16 %v765, %v762
        %v996 = vpack.c.bf16 %v604, %v601
        %v997 = vpack.c.bf16 %v605, %v602
        %v998 = vpack.c.bf16 %v606, %v603
        %v999 = vpack.c.bf16 %v891, %v888
        %v1000 = vpack.c.bf16 %v892, %v889
        %v1001 = vpack.c.bf16 %v893, %v890
        %v1002 = vpack.c.bf16 %v769, %v766
        %v1003 = vpack.c.bf16 %v770, %v767
        %v1004 = vpack.c.bf16 %v771, %v768
        %v1005 = vpack.c.bf16 %v610, %v607
        %v1006 = vpack.c.bf16 %v611, %v608
        %v1007 = vpack.c.bf16 %v612, %v609
        %v1008 = vpack.c.bf16 %v897, %v894
        %v1009 = vpack.c.bf16 %v898, %v895
        %v1010 = vpack.c.bf16 %v899, %v896
        %v1011 = vpack.c.bf16 %v775, %v772
        %v1012 = vpack.c.bf16 %v776, %v773
        %v1013 = vpack.c.bf16 %v777, %v774
        %v1014 = vpack.c.bf16 %v616, %v613
        %v1015 = vpack.c.bf16 %v617, %v614
        %v1016 = vpack.c.bf16 %v618, %v615
        %v1017 = vpack.c.bf16 %v903, %v900
        %v1018 = vpack.c.bf16 %v904, %v901
        %v1019 = vpack.c.bf16 %v905, %v902
        %v1020 = vpack.c.bf16 %v781, %v778
        %v1021 = vpack.c.bf16 %v782, %v779
        %v1022 = vpack.c.bf16 %v783, %v780
        %v1023 = vpack.c.bf16 %v622, %v619
        %v1024 = vpack.c.bf16 %v623, %v620
        %v1025 = vpack.c.bf16 %v624, %v621
        %v1026 = vpack.c.bf16 %v909, %v906
        %v1027 = vpack.c.bf16 %v910, %v907
        %v1028 = vpack.c.bf16 %v911, %v908
        %v1029 = vpack.c.bf16 %v787, %v784
        %v1030 = vpack.c.bf16 %v788, %v785
        %v1031 = vpack.c.bf16 %v789, %v786
        %v1032 = vpack.c.bf16 %v628, %v625
        %v1033 = vpack.c.bf16 %v629, %v626
        %v1034 = vpack.c.bf16 %v630, %v627
        %v1035 = vpack.c.bf16 %v915, %v912
        %v1036 = vpack.c.bf16 %v916, %v913
        %v1037 = vpack.c.bf16 %v917, %v914
        %v1038 = vpack.c.bf16 %v793, %v790
        %v1039 = vpack.c.bf16 %v794, %v791
        %v1040 = vpack.c.bf16 %v795, %v792
        %v1041 = vpack.c.bf16 %v634, %v631
        %v1042 = vpack.c.bf16 %v635, %v632
        %v1043 = vpack.c.bf16 %v636, %v633
        %v1044 = vpack.c.bf16 %v921, %v918
        %v1045 = vpack.c.bf16 %v922, %v919
        %v1046 = vpack.c.bf16 %v923, %v920
        %v1047 = vpack.c.bf16 %v799, %v796
        %v1048 = vpack.c.bf16 %v800, %v797
        %v1049 = vpack.c.bf16 %v801, %v798
        %v1050 = vpack.c.bf16 %v640, %v637
        %v1051 = vpack.c.bf16 %v641, %v638
        %v1052 = vpack.c.bf16 %v642, %v639
        %v1053 = vpack.c.bf16 %v927, %v924
        %v1054 = vpack.c.bf16 %v928, %v925
        %v1055 = vpack.c.bf16 %v929, %v926
        %v1056 = vpack.c.bf16 %v805, %v802
        %v1057 = vpack.c.bf16 %v806, %v803
        %v1058 = vpack.c.bf16 %v807, %v804
        %v1059 = vpack.c.bf16 %v646, %v643
        %v1060 = vpack.c.bf16 %v647, %v644
        %v1061 = vpack.c.bf16 %v648, %v645
        %v1062 = vpack.c.bf16 %v933, %v930
        %v1063 = vpack.c.bf16 %v934, %v931
        %v1064 = vpack.c.bf16 %v935, %v932
        %v1065 = vpack.c.bf16 %v811, %v808
        %v1066 = vpack.c.bf16 %v812, %v809
        %v1067 = vpack.c.bf16 %v813, %v810
        %v1068 = vpack.c.bf16 %v652, %v649
        %v1069 = vpack.c.bf16 %v653, %v650
        %v1070 = vpack.c.bf16 %v654, %v651
        %v1071 = vpack.c.bf16 %v939, %v936
        %v1072 = vpack.c.bf16 %v940, %v937
        %v1073 = vpack.c.bf16 %v941, %v938
        %v1074 = vpack.c.bf16 %v817, %v814
        %v1075 = vpack.c.bf16 %v818, %v815
        %v1076 = vpack.c.bf16 %v819, %v816
        %v1077 = vpack.c.bf16 %v658, %v655
        %v1078 = vpack.c.bf16 %v659, %v656
        %v1079 = vpack.c.bf16 %v660, %v657
        %v1080 = vpack.c.bf16 %v945, %v942
        %v1081 = vpack.c.bf16 %v946, %v943
        %v1082 = vpack.c.bf16 %v947, %v944
        %v1083 = vpack.c.bf16 %v823, %v820
        %v1084 = vpack.c.bf16 %v824, %v821
        %v1085 = vpack.c.bf16 %v825, %v822
        %v1086 = vpack.c.bf16 %v664, %v661
        %v1087 = vpack.c.bf16 %v665, %v662
        %v1088 = vpack.c.bf16 %v666, %v663
        %v1089 = vpack.c.bf16 %v951, %v948
        %v1090 = vpack.c.bf16 %v952, %v949
        %v1091 = vpack.c.bf16 %v953, %v950
        %v1092 = vpack.c.bf16 %v829, %v826
        %v1093 = vpack.c.bf16 %v830, %v827
        %v1094 = vpack.c.bf16 %v831, %v828
        %v1095 = vpack.c.bf16 %v670, %v667
        %v1096 = vpack.c.bf16 %v671, %v668
        %v1097 = vpack.c.bf16 %v672, %v669
        %v1098 = vpack.c.bf16 %v957, %v954
        %v1099 = vpack.c.bf16 %v958, %v955
        %v1100 = vpack.c.bf16 %v959, %v956
        %v1101 = vpack.c.bf16 %v835, %v832
        %v1102 = vpack.c.bf16 %v836, %v833
        %v1103 = vpack.c.bf16 %v837, %v834
        %v1104 = vpack.c.bf16 %v676, %v673
        %v1105 = vpack.c.bf16 %v677, %v674
        %v1106 = vpack.c.bf16 %v678, %v675
        %v1107 = vpack.c.bf16 %v963, %v960
        %v1108 = vpack.c.bf16 %v964, %v961
        %v1109 = vpack.c.bf16 %v965, %v962
        %v1110 = vld [vmem:[#allocation7] sm:$0xf]
        %v1111 = vld [vmem:[#allocation7 + $0x4] sm:$0xf]
        %v1112 = vld [vmem:[#allocation7 + $0x8] sm:$0xf]
        %v1113 = vld [vmem:[#allocation7 + $0xc] sm:$0xf]
        %v1114 = vld [vmem:[#allocation7 + $0x10] sm:$0xf]
        %v1115 = vld [vmem:[#allocation7 + $0x14] sm:$0xf]
        %v1116 = vld [vmem:[#allocation7 + $0x18] sm:$0xf]
        %v1117 = vld [vmem:[#allocation7 + $0x1c] sm:$0xf]
        %v1118 = vld [vmem:[#allocation7 + $0x20] sm:$0xf]
        %v1119 = vld [vmem:[#allocation7 + $0x24] sm:$0xf]
        %v1120 = vld [vmem:[#allocation7 + $0x28] sm:$0xf]
        %v1121 = vld [vmem:[#allocation7 + $0x2c] sm:$0xf]
        %v1122 = vld [vmem:[#allocation7 + $0x30] sm:$0xf]
        %v1123 = vld [vmem:[#allocation7 + $0x34] sm:$0xf]
        %v1124 = vld [vmem:[#allocation7 + $0x38] sm:$0xf]
        %v1125 = vld [vmem:[#allocation7 + $0x3c] sm:$0xf]
        %v1126 = vld [vmem:[#allocation7 + $0x40] sm:$0xf]
        %v1127 = vld [vmem:[#allocation7 + $0x44] sm:$0xf]
        %v1128 = vld [vmem:[#allocation7 + $0x48] sm:$0xf]
        %v1129 = vld [vmem:[#allocation7 + $0x4c] sm:$0xf]
        %v1130 = vld [vmem:[#allocation7 + $0x50] sm:$0xf]
        %v1131 = vld [vmem:[#allocation7 + $0x54] sm:$0xf]
        %v1132 = vld [vmem:[#allocation7 + $0x58] sm:$0xf]
        %v1133 = vld [vmem:[#allocation7 + $0x5c] sm:$0xf]
        %v1134 = vld [vmem:[#allocation7 + $0x60] sm:$0xf]
        %v1135 = vld [vmem:[#allocation7 + $0x64] sm:$0xf]
        %v1136 = vld [vmem:[#allocation7 + $0x68] sm:$0xf]
        %v1137 = vld [vmem:[#allocation7 + $0x6c] sm:$0xf]
        %v1138 = vld [vmem:[#allocation7 + $0x70] sm:$0xf]
        %v1139 = vld [vmem:[#allocation7 + $0x74] sm:$0xf]
        %v1140 = vld [vmem:[#allocation7 + $0x78] sm:$0xf]
        %v1141 = vld [vmem:[#allocation7 + $0x7c] sm:$0xf]
        %v1142 = vld [vmem:[#allocation7 + $0x80] sm:$0xf]
        %v1143 = vld [vmem:[#allocation7 + $0x84] sm:$0xf]
        %v1144 = vld [vmem:[#allocation7 + $0x88] sm:$0xf]
        %v1145 = vld [vmem:[#allocation7 + $0x8c] sm:$0xf]
        %v1146 = vld [vmem:[#allocation7 + $0x90] sm:$0xf]
        %v1147 = vld [vmem:[#allocation7 + $0x94] sm:$0xf]
        %v1148 = vld [vmem:[#allocation7 + $0x98] sm:$0xf]
        %v1149 = vld [vmem:[#allocation7 + $0x9c] sm:$0xf]
        %v1150 = vld [vmem:[#allocation7 + $0xa0] sm:$0xf]
        %v1151 = vld [vmem:[#allocation7 + $0xa4] sm:$0xf]
        %v1152 = vld [vmem:[#allocation7 + $0xa8] sm:$0xf]
        %v1153 = vld [vmem:[#allocation7 + $0xac] sm:$0xf]
        %v1154 = vld [vmem:[#allocation7 + $0xb0] sm:$0xf]
        %v1155 = vld [vmem:[#allocation7 + $0xb4] sm:$0xf]
        %v1156 = vld [vmem:[#allocation7 + $0xb8] sm:$0xf]
        %v1157 = vld [vmem:[#allocation7 + $0xbc] sm:$0xf]
        %v1158 = vld [vmem:[#allocation7 + $0xc0] sm:$0xf]
        %v1159 = vld [vmem:[#allocation7 + $0xc4] sm:$0xf]
        %v1160 = vld [vmem:[#allocation7 + $0xc8] sm:$0xf]
        %v1161 = vld [vmem:[#allocation7 + $0xcc] sm:$0xf]
        %v1162 = vld [vmem:[#allocation7 + $0xd0] sm:$0xf]
        %v1163 = vld [vmem:[#allocation7 + $0xd4] sm:$0xf]
        %v1164 = vld [vmem:[#allocation7 + $0xd8] sm:$0xf]
        %v1165 = vld [vmem:[#allocation7 + $0xdc] sm:$0xf]
        %v1166 = vld [vmem:[#allocation7 + $0xe0] sm:$0xf]
        %v1167 = vld [vmem:[#allocation7 + $0xe4] sm:$0xf]
        %v1168 = vld [vmem:[#allocation7 + $0xe8] sm:$0xf]
        %v1169 = vld [vmem:[#allocation7 + $0xec] sm:$0xf]
        %v1170 = vld [vmem:[#allocation7 + $0xf0] sm:$0xf]
        %v1171 = vld [vmem:[#allocation7 + $0xf4] sm:$0xf]
        %v1172 = vld [vmem:[#allocation7 + $0xf8] sm:$0xf]
        %v1173 = vld [vmem:[#allocation7 + $0xfc] sm:$0xf]
        %v1174 = vld [vmem:[#allocation7 + $0x100] sm:$0xf]
        %v1175 = vld [vmem:[#allocation7 + $0x104] sm:$0xf]
        %v1176 = vld [vmem:[#allocation7 + $0x108] sm:$0xf]
        %v1177 = vld [vmem:[#allocation7 + $0x10c] sm:$0xf]
        %v1178 = vld [vmem:[#allocation7 + $0x110] sm:$0xf]
        %v1179 = vld [vmem:[#allocation7 + $0x114] sm:$0xf]
        %v1180 = vld [vmem:[#allocation7 + $0x118] sm:$0xf]
        %v1181 = vld [vmem:[#allocation7 + $0x11c] sm:$0xf]
        %v1182 = vld [vmem:[#allocation7 + $0x120] sm:$0xf]
        %v1183 = vld [vmem:[#allocation7 + $0x124] sm:$0xf]
        %v1184 = vld [vmem:[#allocation7 + $0x128] sm:$0xf]
        %v1185 = vld [vmem:[#allocation7 + $0x12c] sm:$0xf]
        %v1186 = vld [vmem:[#allocation7 + $0x130] sm:$0xf]
        %v1187 = vld [vmem:[#allocation7 + $0x134] sm:$0xf]
        %v1188 = vld [vmem:[#allocation7 + $0x138] sm:$0xf]
        %v1189 = vld [vmem:[#allocation7 + $0x13c] sm:$0xf]
        %v1190 = vld [vmem:[#allocation7 + $0x140] sm:$0xf]
        %v1191 = vld [vmem:[#allocation7 + $0x144] sm:$0xf]
        %v1192 = vld [vmem:[#allocation7 + $0x148] sm:$0xf]
        %v1193 = vld [vmem:[#allocation7 + $0x14c] sm:$0xf]
        %v1194 = vld [vmem:[#allocation7 + $0x150] sm:$0xf]
        %v1195 = vld [vmem:[#allocation7 + $0x154] sm:$0xf]
        %v1196 = vld [vmem:[#allocation7 + $0x158] sm:$0xf]
        %v1197 = vld [vmem:[#allocation7 + $0x15c] sm:$0xf]
        %v1198 = vld [vmem:[#allocation7 + $0x160] sm:$0xf]
        %v1199 = vld [vmem:[#allocation7 + $0x164] sm:$0xf]
        %v1200 = vld [vmem:[#allocation7 + $0x168] sm:$0xf]
        %v1201 = vld [vmem:[#allocation7 + $0x16c] sm:$0xf]
        %v1202 = vld [vmem:[#allocation7 + $0x170] sm:$0xf]
        %v1203 = vld [vmem:[#allocation7 + $0x174] sm:$0xf]
        %v1204 = vld [vmem:[#allocation7 + $0x178] sm:$0xf]
        %v1205 = vld [vmem:[#allocation7 + $0x17c] sm:$0xf]
        %v1206 = vld [vmem:[#allocation7 + $0x180] sm:$0xf]
        %v1207 = vld [vmem:[#allocation7 + $0x184] sm:$0xf]
        %v1208 = vld [vmem:[#allocation7 + $0x188] sm:$0xf]
        %v1209 = vld [vmem:[#allocation7 + $0x18c] sm:$0xf]
        %v1210 = vld [vmem:[#allocation7 + $0x190] sm:$0xf]
        %v1211 = vld [vmem:[#allocation7 + $0x194] sm:$0xf]
        %v1212 = vld [vmem:[#allocation7 + $0x198] sm:$0xf]
        %v1213 = vld [vmem:[#allocation7 + $0x19c] sm:$0xf]
        %v1214 = vld [vmem:[#allocation7 + $0x1a0] sm:$0xf]
        %v1215 = vld [vmem:[#allocation7 + $0x1a4] sm:$0xf]
        %v1216 = vld [vmem:[#allocation7 + $0x1a8] sm:$0xf]
        %v1217 = vld [vmem:[#allocation7 + $0x1ac] sm:$0xf]
        %v1218 = vld [vmem:[#allocation7 + $0x1b0] sm:$0xf]
        %v1219 = vld [vmem:[#allocation7 + $0x1b4] sm:$0xf]
        %v1220 = vld [vmem:[#allocation7 + $0x1b8] sm:$0xf]
        %v1221 = vld [vmem:[#allocation7 + $0x1bc] sm:$0xf]
        %v1222 = vld [vmem:[#allocation7 + $0x1c0] sm:$0xf]
        %v1223 = vld [vmem:[#allocation7 + $0x1c4] sm:$0xf]
        %v1224 = vld [vmem:[#allocation7 + $0x1c8] sm:$0xf]
        %v1225 = vld [vmem:[#allocation7 + $0x1cc] sm:$0xf]
        %v1226 = vld [vmem:[#allocation7 + $0x1d0] sm:$0xf]
        %v1227 = vld [vmem:[#allocation7 + $0x1d4] sm:$0xf]
        %v1228 = vld [vmem:[#allocation7 + $0x1d8] sm:$0xf]
        %v1229 = vld [vmem:[#allocation7 + $0x1dc] sm:$0xf]
        %v1230 = vld [vmem:[#allocation7 + $0x1e0] sm:$0xf]
        %v1231 = vld [vmem:[#allocation7 + $0x1e4] sm:$0xf]
        %v1232 = vld [vmem:[#allocation7 + $0x1e8] sm:$0xf]
        %v1233 = vld [vmem:[#allocation7 + $0x1ec] sm:$0xf]
        %v1234 = vld [vmem:[#allocation7 + $0x1f0] sm:$0xf]
        %v1235 = vld [vmem:[#allocation7 + $0x1f4] sm:$0xf]
        %v1236 = vld [vmem:[#allocation7 + $0x1f8] sm:$0xf]
        %v1237 = vld [vmem:[#allocation7 + $0x1fc] sm:$0xf]
        %v1238 = vld [vmem:[#allocation7 + $0x200] sm:$0xf]
        %v1239 = vld [vmem:[#allocation7 + $0x204] sm:$0xf]
        %v1240 = vld [vmem:[#allocation7 + $0x208] sm:$0xf]
        %v1241 = vld [vmem:[#allocation7 + $0x20c] sm:$0xf]
        %v1242 = vld [vmem:[#allocation7 + $0x210] sm:$0xf]
        %v1243 = vld [vmem:[#allocation7 + $0x214] sm:$0xf]
        %v1244 = vld [vmem:[#allocation7 + $0x218] sm:$0xf]
        %v1245 = vld [vmem:[#allocation7 + $0x21c] sm:$0xf]
        %v1246 = vld [vmem:[#allocation7 + $0x220] sm:$0xf]
        %v1247 = vld [vmem:[#allocation7 + $0x224] sm:$0xf]
        %v1248 = vld [vmem:[#allocation7 + $0x228] sm:$0xf]
        %v1249 = vld [vmem:[#allocation7 + $0x22c] sm:$0xf]
        %v1250 = vld [vmem:[#allocation7 + $0x230] sm:$0xf]
        %v1251 = vld [vmem:[#allocation7 + $0x234] sm:$0xf]
        %v1252 = vld [vmem:[#allocation7 + $0x238] sm:$0xf]
        %v1253 = vld [vmem:[#allocation7 + $0x23c] sm:$0xf]
        %v1254 = vld [vmem:[%s3] sm:$0x1]
        %v1256 = vperm.slane %v1254, 0
        %v1402 = vunpack.c.l.b16 %v1110
        %v1403 = vunpack.c.l.b16 %v1111
        %v1404 = vunpack.c.l.b16 %v1112
        %v1405 = vunpack.c.l.b16 %v1113
        %v1406 = vunpack.c.l.b16 %v1114
        %v1407 = vunpack.c.l.b16 %v1115
        %v1408 = vunpack.c.l.b16 %v1116
        %v1409 = vunpack.c.l.b16 %v1117
        %v1410 = vunpack.c.l.b16 %v1118
        %v1411 = vunpack.c.l.b16 %v1119
        %v1412 = vunpack.c.l.b16 %v1120
        %v1413 = vunpack.c.l.b16 %v1121
        %v1414 = vunpack.c.l.b16 %v1122
        %v1415 = vunpack.c.l.b16 %v1123
        %v1416 = vunpack.c.l.b16 %v1124
        %v1417 = vunpack.c.l.b16 %v1125
        %v1418 = vunpack.c.l.b16 %v1126
        %v1419 = vunpack.c.l.b16 %v1127
        %v1420 = vunpack.c.l.b16 %v1128
        %v1421 = vunpack.c.l.b16 %v1129
        %v1422 = vunpack.c.l.b16 %v1130
        %v1423 = vunpack.c.l.b16 %v1131
        %v1424 = vunpack.c.l.b16 %v1132
        %v1425 = vunpack.c.l.b16 %v1133
        %v1426 = vunpack.c.l.b16 %v1134
        %v1427 = vunpack.c.l.b16 %v1135
        %v1428 = vunpack.c.l.b16 %v1136
        %v1429 = vunpack.c.l.b16 %v1137
        %v1430 = vunpack.c.l.b16 %v1138
        %v1431 = vunpack.c.l.b16 %v1139
        %v1432 = vunpack.c.l.b16 %v1140
        %v1433 = vunpack.c.l.b16 %v1141
        %v1434 = vunpack.c.l.b16 %v1142
        %v1435 = vunpack.c.l.b16 %v1143
        %v1436 = vunpack.c.l.b16 %v1144
        %v1437 = vunpack.c.l.b16 %v1145
        %v1438 = vunpack.c.l.b16 %v1146
        %v1439 = vunpack.c.l.b16 %v1147
        %v1440 = vunpack.c.l.b16 %v1148
        %v1441 = vunpack.c.l.b16 %v1149
        %v1442 = vunpack.c.l.b16 %v1150
        %v1443 = vunpack.c.l.b16 %v1151
        %v1444 = vunpack.c.l.b16 %v1152
        %v1445 = vunpack.c.l.b16 %v1153
        %v1446 = vunpack.c.l.b16 %v1154
        %v1447 = vunpack.c.l.b16 %v1155
        %v1448 = vunpack.c.l.b16 %v1156
        %v1449 = vunpack.c.l.b16 %v1157
        %v1450 = vunpack.c.l.b16 %v1158
        %v1451 = vunpack.c.l.b16 %v1159
        %v1452 = vunpack.c.l.b16 %v1160
        %v1453 = vunpack.c.l.b16 %v1161
        %v1454 = vunpack.c.l.b16 %v1162
        %v1455 = vunpack.c.l.b16 %v1163
        %v1456 = vunpack.c.l.b16 %v1164
        %v1457 = vunpack.c.l.b16 %v1165
        %v1458 = vunpack.c.l.b16 %v1166
        %v1459 = vunpack.c.l.b16 %v1167
        %v1460 = vunpack.c.l.b16 %v1168
        %v1461 = vunpack.c.l.b16 %v1169
        %v1462 = vunpack.c.l.b16 %v1170
        %v1463 = vunpack.c.l.b16 %v1171
        %v1464 = vunpack.c.l.b16 %v1172
        %v1465 = vunpack.c.l.b16 %v1173
        %v1466 = vunpack.c.l.b16 %v1174
        %v1467 = vunpack.c.l.b16 %v1175
        %v1468 = vunpack.c.l.b16 %v1176
        %v1469 = vunpack.c.l.b16 %v1177
        %v1470 = vunpack.c.l.b16 %v1178
        %v1471 = vunpack.c.l.b16 %v1179
        %v1472 = vunpack.c.l.b16 %v1180
        %v1473 = vunpack.c.l.b16 %v1181
        %v1474 = vunpack.c.l.b16 %v1182
        %v1475 = vunpack.c.l.b16 %v1183
        %v1476 = vunpack.c.l.b16 %v1184
        %v1477 = vunpack.c.l.b16 %v1185
        %v1478 = vunpack.c.l.b16 %v1186
        %v1479 = vunpack.c.l.b16 %v1187
        %v1480 = vunpack.c.l.b16 %v1188
        %v1481 = vunpack.c.l.b16 %v1189
        %v1482 = vunpack.c.l.b16 %v1190
        %v1483 = vunpack.c.l.b16 %v1191
        %v1484 = vunpack.c.l.b16 %v1192
        %v1485 = vunpack.c.l.b16 %v1193
        %v1486 = vunpack.c.l.b16 %v1194
        %v1487 = vunpack.c.l.b16 %v1195
        %v1488 = vunpack.c.l.b16 %v1196
        %v1489 = vunpack.c.l.b16 %v1197
        %v1490 = vunpack.c.l.b16 %v1198
        %v1491 = vunpack.c.l.b16 %v1199
        %v1492 = vunpack.c.l.b16 %v1200
        %v1493 = vunpack.c.l.b16 %v1201
        %v1494 = vunpack.c.l.b16 %v1202
        %v1495 = vunpack.c.l.b16 %v1203
        %v1496 = vunpack.c.l.b16 %v1204
        %v1497 = vunpack.c.l.b16 %v1205
        %v1498 = vunpack.c.l.b16 %v1206
        %v1499 = vunpack.c.l.b16 %v1207
        %v1500 = vunpack.c.l.b16 %v1208
        %v1501 = vunpack.c.l.b16 %v1209
        %v1502 = vunpack.c.l.b16 %v1210
        %v1503 = vunpack.c.l.b16 %v1211
        %v1504 = vunpack.c.l.b16 %v1212
        %v1505 = vunpack.c.l.b16 %v1213
        %v1506 = vunpack.c.l.b16 %v1214
        %v1507 = vunpack.c.l.b16 %v1215
        %v1508 = vunpack.c.l.b16 %v1216
        %v1509 = vunpack.c.l.b16 %v1217
        %v1510 = vunpack.c.l.b16 %v1218
        %v1511 = vunpack.c.l.b16 %v1219
        %v1512 = vunpack.c.l.b16 %v1220
        %v1513 = vunpack.c.l.b16 %v1221
        %v1514 = vunpack.c.l.b16 %v1222
        %v1515 = vunpack.c.l.b16 %v1223
        %v1516 = vunpack.c.l.b16 %v1224
        %v1517 = vunpack.c.l.b16 %v1225
        %v1518 = vunpack.c.l.b16 %v1226
        %v1519 = vunpack.c.l.b16 %v1227
        %v1520 = vunpack.c.l.b16 %v1228
        %v1521 = vunpack.c.l.b16 %v1229
        %v1522 = vunpack.c.l.b16 %v1230
        %v1523 = vunpack.c.l.b16 %v1231
        %v1524 = vunpack.c.l.b16 %v1232
        %v1525 = vunpack.c.l.b16 %v1233
        %v1526 = vunpack.c.l.b16 %v1234
        %v1527 = vunpack.c.l.b16 %v1235
        %v1528 = vunpack.c.l.b16 %v1236
        %v1529 = vunpack.c.l.b16 %v1237
        %v1530 = vunpack.c.l.b16 %v1238
        %v1531 = vunpack.c.l.b16 %v1239
        %v1532 = vunpack.c.l.b16 %v1240
        %v1533 = vunpack.c.l.b16 %v1241
        %v1534 = vunpack.c.l.b16 %v1242
        %v1535 = vunpack.c.l.b16 %v1243
        %v1536 = vunpack.c.l.b16 %v1244
        %v1537 = vunpack.c.l.b16 %v1245
        %v1538 = vunpack.c.l.b16 %v1246
        %v1539 = vunpack.c.l.b16 %v1247
        %v1540 = vunpack.c.l.b16 %v1248
        %v1541 = vunpack.c.l.b16 %v1249
        %v1542 = vunpack.c.l.b16 %v1250
        %v1543 = vunpack.c.l.b16 %v1251
        %v1544 = vunpack.c.l.b16 %v1252
        %v1545 = vunpack.c.l.b16 %v1253
        %v1546 = vpack.c.b16 %v1403, %v1402
        %v1547 = vpack.c.b16 %v1405, %v1404
        %v1548 = vpack.c.b16 %v1407, %v1406
        %v1549 = vpack.c.b16 %v1409, %v1408
        %v1550 = vpack.c.b16 %v1411, %v1410
        %v1551 = vpack.c.b16 %v1413, %v1412
        %v1552 = vpack.c.b16 %v1415, %v1414
        %v1553 = vpack.c.b16 %v1417, %v1416
        %v1554 = vpack.c.b16 %v1419, %v1418
        %v1555 = vpack.c.b16 %v1421, %v1420
        %v1556 = vpack.c.b16 %v1423, %v1422
        %v1557 = vpack.c.b16 %v1425, %v1424
        %v1558 = vpack.c.b16 %v1427, %v1426
        %v1559 = vpack.c.b16 %v1429, %v1428
        %v1560 = vpack.c.b16 %v1431, %v1430
        %v1561 = vpack.c.b16 %v1433, %v1432
        %v1562 = vpack.c.b16 %v1435, %v1434
        %v1563 = vpack.c.b16 %v1437, %v1436
        %v1564 = vpack.c.b16 %v1439, %v1438
        %v1565 = vpack.c.b16 %v1441, %v1440
        %v1566 = vpack.c.b16 %v1443, %v1442
        %v1567 = vpack.c.b16 %v1445, %v1444
        %v1568 = vpack.c.b16 %v1447, %v1446
        %v1569 = vpack.c.b16 %v1449, %v1448
        %v1570 = vpack.c.b16 %v1451, %v1450
        %v1571 = vpack.c.b16 %v1453, %v1452
        %v1572 = vpack.c.b16 %v1455, %v1454
        %v1573 = vpack.c.b16 %v1457, %v1456
        %v1574 = vpack.c.b16 %v1459, %v1458
        %v1575 = vpack.c.b16 %v1461, %v1460
        %v1576 = vpack.c.b16 %v1463, %v1462
        %v1577 = vpack.c.b16 %v1465, %v1464
        %v1578 = vpack.c.b16 %v1467, %v1466
        %v1579 = vpack.c.b16 %v1469, %v1468
        %v1580 = vpack.c.b16 %v1471, %v1470
        %v1581 = vpack.c.b16 %v1473, %v1472
        %v1582 = vpack.c.b16 %v1475, %v1474
        %v1583 = vpack.c.b16 %v1477, %v1476
        %v1584 = vpack.c.b16 %v1479, %v1478
        %v1585 = vpack.c.b16 %v1481, %v1480
        %v1586 = vpack.c.b16 %v1483, %v1482
        %v1587 = vpack.c.b16 %v1485, %v1484
        %v1588 = vpack.c.b16 %v1487, %v1486
        %v1589 = vpack.c.b16 %v1489, %v1488
        %v1590 = vpack.c.b16 %v1491, %v1490
        %v1591 = vpack.c.b16 %v1493, %v1492
        %v1592 = vpack.c.b16 %v1495, %v1494
        %v1593 = vpack.c.b16 %v1497, %v1496
        %v1594 = vpack.c.b16 %v1499, %v1498
        %v1595 = vpack.c.b16 %v1501, %v1500
        %v1596 = vpack.c.b16 %v1503, %v1502
        %v1597 = vpack.c.b16 %v1505, %v1504
        %v1598 = vpack.c.b16 %v1507, %v1506
        %v1599 = vpack.c.b16 %v1509, %v1508
        %v1600 = vpack.c.b16 %v1511, %v1510
        %v1601 = vpack.c.b16 %v1513, %v1512
        %v1602 = vpack.c.b16 %v1515, %v1514
        %v1603 = vpack.c.b16 %v1517, %v1516
        %v1604 = vpack.c.b16 %v1519, %v1518
        %v1605 = vpack.c.b16 %v1521, %v1520
        %v1606 = vpack.c.b16 %v1523, %v1522
        %v1607 = vpack.c.b16 %v1525, %v1524
        %v1608 = vpack.c.b16 %v1527, %v1526
        %v1609 = vpack.c.b16 %v1529, %v1528
        %v1610 = vpack.c.b16 %v1531, %v1530
        %v1611 = vpack.c.b16 %v1533, %v1532
        %v1612 = vpack.c.b16 %v1535, %v1534
        %v1613 = vpack.c.b16 %v1537, %v1536
        %v1614 = vpack.c.b16 %v1539, %v1538
        %v1615 = vpack.c.b16 %v1541, %v1540
        %v1616 = vpack.c.b16 %v1543, %v1542
        %v1617 = vpack.c.b16 %v1545, %v1544
        %1690 = vmatpush.bf16.msra.mxu0 %v1553
        %1691 = vmatpush.bf16.msra.mxu0 %v1552
        %1692 = vmatpush.bf16.msra.mxu0 %v1551
        %1693 = vmatpush.bf16.msra.mxu0 %v1550
        %1694 = vmatpush.bf16.msra.mxu0 %v1549
        %1695 = vmatpush.bf16.msra.mxu0 %v1548
        %1696 = vmatpush.bf16.msra.mxu0 %v1547
        %1697 = vmatpush.bf16.msra.mxu0 %v1546
        %1698 = vmatmul.bf16.gmra.mxu0 %v966
        %v1699 = vpop.f32.mrf.mxu0
        %v1700 = vadd.f32 %v1256, %v1699
        %v1701 = vpop.f32.mrf.mxu0
        %v1702 = vadd.f32 %v1256, %v1701
        %1703 = vmatmul.bf16.gmra.mxu0 %v975
        %v1704 = vpop.f32.mrf.mxu0
        %v1705 = vadd.f32 %v1256, %v1704
        %v1706 = vpop.f32.mrf.mxu0
        %v1707 = vadd.f32 %v1256, %v1706
        %1708 = vmatmul.bf16.gmra.mxu0 %v984
        %v1709 = vpop.f32.mrf.mxu0
        %v1710 = vadd.f32 %v1256, %v1709
        %v1711 = vpop.f32.mrf.mxu0
        %v1712 = vadd.f32 %v1256, %v1711
        %1713 = vmatmul.bf16.gmra.mxu0 %v993
        %v1714 = vpop.f32.mrf.mxu0
        %v1715 = vadd.f32 %v1256, %v1714
        %v1716 = vpop.f32.mrf.mxu0
        %v1717 = vadd.f32 %v1256, %v1716
        %1718 = vmatmul.bf16.gmra.mxu0 %v1002
        %v1719 = vpop.f32.mrf.mxu0
        %v1720 = vadd.f32 %v1256, %v1719
        %v1721 = vpop.f32.mrf.mxu0
        %v1722 = vadd.f32 %v1256, %v1721
        %1723 = vmatmul.bf16.gmra.mxu0 %v1011
        %v1724 = vpop.f32.mrf.mxu0
        %v1725 = vadd.f32 %v1256, %v1724
        %v1726 = vpop.f32.mrf.mxu0
        %v1727 = vadd.f32 %v1256, %v1726
        %1728 = vmatmul.bf16.gmra.mxu0 %v1020
        %v1729 = vpop.f32.mrf.mxu0
        %v1730 = vadd.f32 %v1256, %v1729
        %v1731 = vpop.f32.mrf.mxu0
        %v1732 = vadd.f32 %v1256, %v1731
        %1733 = vmatmul.bf16.gmra.mxu0 %v1029
        %v1734 = vpop.f32.mrf.mxu0
        %v1735 = vadd.f32 %v1256, %v1734
        %v1736 = vpop.f32.mrf.mxu0
        %v1737 = vadd.f32 %v1256, %v1736
        %1738 = vmatmul.bf16.gmra.mxu0 %v1038
        %v1739 = vpop.f32.mrf.mxu0
        %v1740 = vadd.f32 %v1256, %v1739
        %v1741 = vpop.f32.mrf.mxu0
        %v1742 = vadd.f32 %v1256, %v1741
        %1743 = vmatmul.bf16.gmra.mxu0 %v1047
        %v1744 = vpop.f32.mrf.mxu0
        %v1745 = vadd.f32 %v1256, %v1744
        %v1746 = vpop.f32.mrf.mxu0
        %v1747 = vadd.f32 %v1256, %v1746
        %1748 = vmatmul.bf16.gmra.mxu0 %v1056
        %v1749 = vpop.f32.mrf.mxu0
        %v1750 = vadd.f32 %v1256, %v1749
        %v1751 = vpop.f32.mrf.mxu0
        %v1752 = vadd.f32 %v1256, %v1751
        %1753 = vmatmul.bf16.gmra.mxu0 %v1065
        %v1754 = vpop.f32.mrf.mxu0
        %v1755 = vadd.f32 %v1256, %v1754
        %v1756 = vpop.f32.mrf.mxu0
        %v1757 = vadd.f32 %v1256, %v1756
        %1758 = vmatmul.bf16.gmra.mxu0 %v1074
        %v1759 = vpop.f32.mrf.mxu0
        %v1760 = vadd.f32 %v1256, %v1759
        %v1761 = vpop.f32.mrf.mxu0
        %v1762 = vadd.f32 %v1256, %v1761
        %1763 = vmatmul.bf16.gmra.mxu0 %v1083
        %v1764 = vpop.f32.mrf.mxu0
        %v1765 = vadd.f32 %v1256, %v1764
        %v1766 = vpop.f32.mrf.mxu0
        %v1767 = vadd.f32 %v1256, %v1766
        %1768 = vmatmul.bf16.gmra.mxu0 %v1092
        %v1769 = vpop.f32.mrf.mxu0
        %v1770 = vadd.f32 %v1256, %v1769
        %v1771 = vpop.f32.mrf.mxu0
        %v1772 = vadd.f32 %v1256, %v1771
        %1773 = vmatmul.bf16.gmra.mxu0 %v1101
        %v1774 = vpop.f32.mrf.mxu0
        %v1775 = vadd.f32 %v1256, %v1774
        %v1776 = vpop.f32.mrf.mxu0
        %v1777 = vadd.f32 %v1256, %v1776
        %1778 = vdwg.mxu0
        %1779 = vmatpush.bf16.msra.mxu0 %v1561
        %1780 = vmatpush.bf16.msra.mxu0 %v1560
        %1781 = vmatpush.bf16.msra.mxu0 %v1559
        %1782 = vmatpush.bf16.msra.mxu0 %v1558
        %1783 = vmatpush.bf16.msra.mxu0 %v1557
        %1784 = vmatpush.bf16.msra.mxu0 %v1556
        %1785 = vmatpush.bf16.msra.mxu0 %v1555
        %1786 = vmatpush.bf16.msra.mxu0 %v1554
        %1787 = vmatmul.bf16.gmra.mxu0 %v967
        %v1788 = vpop.f32.mrf.mxu0
        %v1789 = vadd.f32 %v1700, %v1788
        %v1790 = vpop.f32.mrf.mxu0
        %v1791 = vadd.f32 %v1702, %v1790
        %1792 = vmatmul.bf16.gmra.mxu0 %v976
        %v1793 = vpop.f32.mrf.mxu0
        %v1794 = vadd.f32 %v1705, %v1793
        %v1795 = vpop.f32.mrf.mxu0
        %v1796 = vadd.f32 %v1707, %v1795
        %1797 = vmatmul.bf16.gmra.mxu0 %v985
        %v1798 = vpop.f32.mrf.mxu0
        %v1799 = vadd.f32 %v1710, %v1798
        %v1800 = vpop.f32.mrf.mxu0
        %v1801 = vadd.f32 %v1712, %v1800
        %1802 = vmatmul.bf16.gmra.mxu0 %v994
        %v1803 = vpop.f32.mrf.mxu0
        %v1804 = vadd.f32 %v1715, %v1803
        %v1805 = vpop.f32.mrf.mxu0
        %v1806 = vadd.f32 %v1717, %v1805
        %1807 = vmatmul.bf16.gmra.mxu0 %v1003
        %v1808 = vpop.f32.mrf.mxu0
        %v1809 = vadd.f32 %v1720, %v1808
        %v1810 = vpop.f32.mrf.mxu0
        %v1811 = vadd.f32 %v1722, %v1810
        %1812 = vmatmul.bf16.gmra.mxu0 %v1012
        %v1813 = vpop.f32.mrf.mxu0
        %v1814 = vadd.f32 %v1725, %v1813
        %v1815 = vpop.f32.mrf.mxu0
        %v1816 = vadd.f32 %v1727, %v1815
        %1817 = vmatmul.bf16.gmra.mxu0 %v1021
        %v1818 = vpop.f32.mrf.mxu0
        %v1819 = vadd.f32 %v1730, %v1818
        %v1820 = vpop.f32.mrf.mxu0
        %v1821 = vadd.f32 %v1732, %v1820
        %1822 = vmatmul.bf16.gmra.mxu0 %v1030
        %v1823 = vpop.f32.mrf.mxu0
        %v1824 = vadd.f32 %v1735, %v1823
        %v1825 = vpop.f32.mrf.mxu0
        %v1826 = vadd.f32 %v1737, %v1825
        %1827 = vmatmul.bf16.gmra.mxu0 %v1039
        %v1828 = vpop.f32.mrf.mxu0
        %v1829 = vadd.f32 %v1740, %v1828
        %v1830 = vpop.f32.mrf.mxu0
        %v1831 = vadd.f32 %v1742, %v1830
        %1832 = vmatmul.bf16.gmra.mxu0 %v1048
        %v1833 = vpop.f32.mrf.mxu0
        %v1834 = vadd.f32 %v1745, %v1833
        %v1835 = vpop.f32.mrf.mxu0
        %v1836 = vadd.f32 %v1747, %v1835
        %1837 = vmatmul.bf16.gmra.mxu0 %v1057
        %v1838 = vpop.f32.mrf.mxu0
        %v1839 = vadd.f32 %v1750, %v1838
        %v1840 = vpop.f32.mrf.mxu0
        %v1841 = vadd.f32 %v1752, %v1840
        %1842 = vmatmul.bf16.gmra.mxu0 %v1066
        %v1843 = vpop.f32.mrf.mxu0
        %v1844 = vadd.f32 %v1755, %v1843
        %v1845 = vpop.f32.mrf.mxu0
        %v1846 = vadd.f32 %v1757, %v1845
        %1847 = vmatmul.bf16.gmra.mxu0 %v1075
        %v1848 = vpop.f32.mrf.mxu0
        %v1849 = vadd.f32 %v1760, %v1848
        %v1850 = vpop.f32.mrf.mxu0
        %v1851 = vadd.f32 %v1762, %v1850
        %1852 = vmatmul.bf16.gmra.mxu0 %v1084
        %v1853 = vpop.f32.mrf.mxu0
        %v1854 = vadd.f32 %v1765, %v1853
        %v1855 = vpop.f32.mrf.mxu0
        %v1856 = vadd.f32 %v1767, %v1855
        %1857 = vmatmul.bf16.gmra.mxu0 %v1093
        %v1858 = vpop.f32.mrf.mxu0
        %v1859 = vadd.f32 %v1770, %v1858
        %v1860 = vpop.f32.mrf.mxu0
        %v1861 = vadd.f32 %v1772, %v1860
        %1862 = vmatmul.bf16.gmra.mxu0 %v1102
        %v1863 = vpop.f32.mrf.mxu0
        %v1864 = vadd.f32 %v1775, %v1863
        %v1865 = vpop.f32.mrf.mxu0
        %v1866 = vadd.f32 %v1777, %v1865
        %1867 = vdwg.mxu0
        %1868 = vmatpush.bf16.msra.mxu0 %v1569
        %1869 = vmatpush.bf16.msra.mxu0 %v1568
        %1870 = vmatpush.bf16.msra.mxu0 %v1567
        %1871 = vmatpush.bf16.msra.mxu0 %v1566
        %1872 = vmatpush.bf16.msra.mxu0 %v1565
        %1873 = vmatpush.bf16.msra.mxu0 %v1564
        %1874 = vmatpush.bf16.msra.mxu0 %v1563
        %1875 = vmatpush.bf16.msra.mxu0 %v1562
        %1876 = vmatmul.bf16.gmra.mxu0 %v968
        %v1877 = vpop.f32.mrf.mxu0
        %v1878 = vadd.f32 %v1789, %v1877
        %v1879 = vpop.f32.mrf.mxu0
        %v1880 = vadd.f32 %v1791, %v1879
        %1881 = vmatmul.bf16.gmra.mxu0 %v977
        %v1882 = vpop.f32.mrf.mxu0
        %v1883 = vadd.f32 %v1794, %v1882
        %v1884 = vpop.f32.mrf.mxu0
        %v1885 = vadd.f32 %v1796, %v1884
        %1886 = vmatmul.bf16.gmra.mxu0 %v986
        %v1887 = vpop.f32.mrf.mxu0
        %v1888 = vadd.f32 %v1799, %v1887
        %v1889 = vpop.f32.mrf.mxu0
        %v1890 = vadd.f32 %v1801, %v1889
        %1891 = vmatmul.bf16.gmra.mxu0 %v995
        %v1892 = vpop.f32.mrf.mxu0
        %v1893 = vadd.f32 %v1804, %v1892
        %v1894 = vpop.f32.mrf.mxu0
        %v1895 = vadd.f32 %v1806, %v1894
        %1896 = vmatmul.bf16.gmra.mxu0 %v1004
        %v1897 = vpop.f32.mrf.mxu0
        %v1898 = vadd.f32 %v1809, %v1897
        %v1899 = vpop.f32.mrf.mxu0
        %v1900 = vadd.f32 %v1811, %v1899
        %1901 = vmatmul.bf16.gmra.mxu0 %v1013
        %v1902 = vpop.f32.mrf.mxu0
        %v1903 = vadd.f32 %v1814, %v1902
        %v1904 = vpop.f32.mrf.mxu0
        %v1905 = vadd.f32 %v1816, %v1904
        %1906 = vmatmul.bf16.gmra.mxu0 %v1022
        %v1907 = vpop.f32.mrf.mxu0
        %v1908 = vadd.f32 %v1819, %v1907
        %v1909 = vpop.f32.mrf.mxu0
        %v1910 = vadd.f32 %v1821, %v1909
        %1911 = vmatmul.bf16.gmra.mxu0 %v1031
        %v1912 = vpop.f32.mrf.mxu0
        %v1913 = vadd.f32 %v1824, %v1912
        %v1914 = vpop.f32.mrf.mxu0
        %v1915 = vadd.f32 %v1826, %v1914
        %1916 = vmatmul.bf16.gmra.mxu0 %v1040
        %v1917 = vpop.f32.mrf.mxu0
        %v1918 = vadd.f32 %v1829, %v1917
        %v1919 = vpop.f32.mrf.mxu0
        %v1920 = vadd.f32 %v1831, %v1919
        %1921 = vmatmul.bf16.gmra.mxu0 %v1049
        %v1922 = vpop.f32.mrf.mxu0
        %v1923 = vadd.f32 %v1834, %v1922
        %v1924 = vpop.f32.mrf.mxu0
        %v1925 = vadd.f32 %v1836, %v1924
        %1926 = vmatmul.bf16.gmra.mxu0 %v1058
        %v1927 = vpop.f32.mrf.mxu0
        %v1928 = vadd.f32 %v1839, %v1927
        %v1929 = vpop.f32.mrf.mxu0
        %v1930 = vadd.f32 %v1841, %v1929
        %1931 = vmatmul.bf16.gmra.mxu0 %v1067
        %v1932 = vpop.f32.mrf.mxu0
        %v1933 = vadd.f32 %v1844, %v1932
        %v1934 = vpop.f32.mrf.mxu0
        %v1935 = vadd.f32 %v1846, %v1934
        %1936 = vmatmul.bf16.gmra.mxu0 %v1076
        %v1937 = vpop.f32.mrf.mxu0
        %v1938 = vadd.f32 %v1849, %v1937
        %v1939 = vpop.f32.mrf.mxu0
        %v1940 = vadd.f32 %v1851, %v1939
        %1941 = vmatmul.bf16.gmra.mxu0 %v1085
        %v1942 = vpop.f32.mrf.mxu0
        %v1943 = vadd.f32 %v1854, %v1942
        %v1944 = vpop.f32.mrf.mxu0
        %v1945 = vadd.f32 %v1856, %v1944
        %1946 = vmatmul.bf16.gmra.mxu0 %v1094
        %v1947 = vpop.f32.mrf.mxu0
        %v1948 = vadd.f32 %v1859, %v1947
        %v1949 = vpop.f32.mrf.mxu0
        %v1950 = vadd.f32 %v1861, %v1949
        %1951 = vmatmul.bf16.gmra.mxu0 %v1103
        %v1952 = vpop.f32.mrf.mxu0
        %v1953 = vadd.f32 %v1864, %v1952
        %v1954 = vpop.f32.mrf.mxu0
        %v1955 = vadd.f32 %v1866, %v1954
        %1956 = vdwg.mxu0
        %1957 = vmatpush.bf16.msra.mxu0 %v1577
        %1958 = vmatpush.bf16.msra.mxu0 %v1576
        %1959 = vmatpush.bf16.msra.mxu0 %v1575
        %1960 = vmatpush.bf16.msra.mxu0 %v1574
        %1961 = vmatpush.bf16.msra.mxu0 %v1573
        %1962 = vmatpush.bf16.msra.mxu0 %v1572
        %1963 = vmatpush.bf16.msra.mxu0 %v1571
        %1964 = vmatpush.bf16.msra.mxu0 %v1570
        %1965 = vmatmul.bf16.gmra.mxu0 %v969
        %v1966 = vpop.f32.mrf.mxu0
        %v1967 = vadd.f32 %v1878, %v1966
        %v1968 = vpop.f32.mrf.mxu0
        %v1969 = vadd.f32 %v1880, %v1968
        %1970 = vmatmul.bf16.gmra.mxu0 %v978
        %v1971 = vpop.f32.mrf.mxu0
        %v1972 = vadd.f32 %v1883, %v1971
        %v1973 = vpop.f32.mrf.mxu0
        %v1974 = vadd.f32 %v1885, %v1973
        %1975 = vmatmul.bf16.gmra.mxu0 %v987
        %v1976 = vpop.f32.mrf.mxu0
        %v1977 = vadd.f32 %v1888, %v1976
        %v1978 = vpop.f32.mrf.mxu0
        %v1979 = vadd.f32 %v1890, %v1978
        %1980 = vmatmul.bf16.gmra.mxu0 %v996
        %v1981 = vpop.f32.mrf.mxu0
        %v1982 = vadd.f32 %v1893, %v1981
        %v1983 = vpop.f32.mrf.mxu0
        %v1984 = vadd.f32 %v1895, %v1983
        %1985 = vmatmul.bf16.gmra.mxu0 %v1005
        %v1986 = vpop.f32.mrf.mxu0
        %v1987 = vadd.f32 %v1898, %v1986
        %v1988 = vpop.f32.mrf.mxu0
        %v1989 = vadd.f32 %v1900, %v1988
        %1990 = vmatmul.bf16.gmra.mxu0 %v1014
        %v1991 = vpop.f32.mrf.mxu0
        %v1992 = vadd.f32 %v1903, %v1991
        %v1993 = vpop.f32.mrf.mxu0
        %v1994 = vadd.f32 %v1905, %v1993
        %1995 = vmatmul.bf16.gmra.mxu0 %v1023
        %v1996 = vpop.f32.mrf.mxu0
        %v1997 = vadd.f32 %v1908, %v1996
        %v1998 = vpop.f32.mrf.mxu0
        %v1999 = vadd.f32 %v1910, %v1998
        %2000 = vmatmul.bf16.gmra.mxu0 %v1032
        %v2001 = vpop.f32.mrf.mxu0
        %v2002 = vadd.f32 %v1913, %v2001
        %v2003 = vpop.f32.mrf.mxu0
        %v2004 = vadd.f32 %v1915, %v2003
        %2005 = vmatmul.bf16.gmra.mxu0 %v1041
        %v2006 = vpop.f32.mrf.mxu0
        %v2007 = vadd.f32 %v1918, %v2006
        %v2008 = vpop.f32.mrf.mxu0
        %v2009 = vadd.f32 %v1920, %v2008
        %2010 = vmatmul.bf16.gmra.mxu0 %v1050
        %v2011 = vpop.f32.mrf.mxu0
        %v2012 = vadd.f32 %v1923, %v2011
        %v2013 = vpop.f32.mrf.mxu0
        %v2014 = vadd.f32 %v1925, %v2013
        %2015 = vmatmul.bf16.gmra.mxu0 %v1059
        %v2016 = vpop.f32.mrf.mxu0
        %v2017 = vadd.f32 %v1928, %v2016
        %v2018 = vpop.f32.mrf.mxu0
        %v2019 = vadd.f32 %v1930, %v2018
        %2020 = vmatmul.bf16.gmra.mxu0 %v1068
        %v2021 = vpop.f32.mrf.mxu0
        %v2022 = vadd.f32 %v1933, %v2021
        %v2023 = vpop.f32.mrf.mxu0
        %v2024 = vadd.f32 %v1935, %v2023
        %2025 = vmatmul.bf16.gmra.mxu0 %v1077
        %v2026 = vpop.f32.mrf.mxu0
        %v2027 = vadd.f32 %v1938, %v2026
        %v2028 = vpop.f32.mrf.mxu0
        %v2029 = vadd.f32 %v1940, %v2028
        %2030 = vmatmul.bf16.gmra.mxu0 %v1086
        %v2031 = vpop.f32.mrf.mxu0
        %v2032 = vadd.f32 %v1943, %v2031
        %v2033 = vpop.f32.mrf.mxu0
        %v2034 = vadd.f32 %v1945, %v2033
        %2035 = vmatmul.bf16.gmra.mxu0 %v1095
        %v2036 = vpop.f32.mrf.mxu0
        %v2037 = vadd.f32 %v1948, %v2036
        %v2038 = vpop.f32.mrf.mxu0
        %v2039 = vadd.f32 %v1950, %v2038
        %2040 = vmatmul.bf16.gmra.mxu0 %v1104
        %v2041 = vpop.f32.mrf.mxu0
        %v2042 = vadd.f32 %v1953, %v2041
        %v2043 = vpop.f32.mrf.mxu0
        %v2044 = vadd.f32 %v1955, %v2043
        %2045 = vdwg.mxu0
        %2046 = vmatpush.bf16.msra.mxu0 %v1585
        %2047 = vmatpush.bf16.msra.mxu0 %v1584
        %2048 = vmatpush.bf16.msra.mxu0 %v1583
        %2049 = vmatpush.bf16.msra.mxu0 %v1582
        %2050 = vmatpush.bf16.msra.mxu0 %v1581
        %2051 = vmatpush.bf16.msra.mxu0 %v1580
        %2052 = vmatpush.bf16.msra.mxu0 %v1579
        %2053 = vmatpush.bf16.msra.mxu0 %v1578
        %2054 = vmatmul.bf16.gmra.mxu0 %v970
        %v2055 = vpop.f32.mrf.mxu0
        %v2056 = vadd.f32 %v1967, %v2055
        %v2057 = vpop.f32.mrf.mxu0
        %v2058 = vadd.f32 %v1969, %v2057
        %2059 = vmatmul.bf16.gmra.mxu0 %v979
        %v2060 = vpop.f32.mrf.mxu0
        %v2061 = vadd.f32 %v1972, %v2060
        %v2062 = vpop.f32.mrf.mxu0
        %v2063 = vadd.f32 %v1974, %v2062
        %2064 = vmatmul.bf16.gmra.mxu0 %v988
        %v2065 = vpop.f32.mrf.mxu0
        %v2066 = vadd.f32 %v1977, %v2065
        %v2067 = vpop.f32.mrf.mxu0
        %v2068 = vadd.f32 %v1979, %v2067
        %2069 = vmatmul.bf16.gmra.mxu0 %v997
        %v2070 = vpop.f32.mrf.mxu0
        %v2071 = vadd.f32 %v1982, %v2070
        %v2072 = vpop.f32.mrf.mxu0
        %v2073 = vadd.f32 %v1984, %v2072
        %2074 = vmatmul.bf16.gmra.mxu0 %v1006
        %v2075 = vpop.f32.mrf.mxu0
        %v2076 = vadd.f32 %v1987, %v2075
        %v2077 = vpop.f32.mrf.mxu0
        %v2078 = vadd.f32 %v1989, %v2077
        %2079 = vmatmul.bf16.gmra.mxu0 %v1015
        %v2080 = vpop.f32.mrf.mxu0
        %v2081 = vadd.f32 %v1992, %v2080
        %v2082 = vpop.f32.mrf.mxu0
        %v2083 = vadd.f32 %v1994, %v2082
        %2084 = vmatmul.bf16.gmra.mxu0 %v1024
        %v2085 = vpop.f32.mrf.mxu0
        %v2086 = vadd.f32 %v1997, %v2085
        %v2087 = vpop.f32.mrf.mxu0
        %v2088 = vadd.f32 %v1999, %v2087
        %2089 = vmatmul.bf16.gmra.mxu0 %v1033
        %v2090 = vpop.f32.mrf.mxu0
        %v2091 = vadd.f32 %v2002, %v2090
        %v2092 = vpop.f32.mrf.mxu0
        %v2093 = vadd.f32 %v2004, %v2092
        %2094 = vmatmul.bf16.gmra.mxu0 %v1042
        %v2095 = vpop.f32.mrf.mxu0
        %v2096 = vadd.f32 %v2007, %v2095
        %v2097 = vpop.f32.mrf.mxu0
        %v2098 = vadd.f32 %v2009, %v2097
        %2099 = vmatmul.bf16.gmra.mxu0 %v1051
        %v2100 = vpop.f32.mrf.mxu0
        %v2101 = vadd.f32 %v2012, %v2100
        %v2102 = vpop.f32.mrf.mxu0
        %v2103 = vadd.f32 %v2014, %v2102
        %2104 = vmatmul.bf16.gmra.mxu0 %v1060
        %v2105 = vpop.f32.mrf.mxu0
        %v2106 = vadd.f32 %v2017, %v2105
        %v2107 = vpop.f32.mrf.mxu0
        %v2108 = vadd.f32 %v2019, %v2107
        %2109 = vmatmul.bf16.gmra.mxu0 %v1069
        %v2110 = vpop.f32.mrf.mxu0
        %v2111 = vadd.f32 %v2022, %v2110
        %v2112 = vpop.f32.mrf.mxu0
        %v2113 = vadd.f32 %v2024, %v2112
        %2114 = vmatmul.bf16.gmra.mxu0 %v1078
        %v2115 = vpop.f32.mrf.mxu0
        %v2116 = vadd.f32 %v2027, %v2115
        %v2117 = vpop.f32.mrf.mxu0
        %v2118 = vadd.f32 %v2029, %v2117
        %2119 = vmatmul.bf16.gmra.mxu0 %v1087
        %v2120 = vpop.f32.mrf.mxu0
        %v2121 = vadd.f32 %v2032, %v2120
        %v2122 = vpop.f32.mrf.mxu0
        %v2123 = vadd.f32 %v2034, %v2122
        %2124 = vmatmul.bf16.gmra.mxu0 %v1096
        %v2125 = vpop.f32.mrf.mxu0
        %v2126 = vadd.f32 %v2037, %v2125
        %v2127 = vpop.f32.mrf.mxu0
        %v2128 = vadd.f32 %v2039, %v2127
        %2129 = vmatmul.bf16.gmra.mxu0 %v1105
        %v2130 = vpop.f32.mrf.mxu0
        %v2131 = vadd.f32 %v2042, %v2130
        %v2132 = vpop.f32.mrf.mxu0
        %v2133 = vadd.f32 %v2044, %v2132
        %2134 = vdwg.mxu0
        %2135 = vmatpush.bf16.msra.mxu0 %v1593
        %2136 = vmatpush.bf16.msra.mxu0 %v1592
        %2137 = vmatpush.bf16.msra.mxu0 %v1591
        %2138 = vmatpush.bf16.msra.mxu0 %v1590
        %2139 = vmatpush.bf16.msra.mxu0 %v1589
        %2140 = vmatpush.bf16.msra.mxu0 %v1588
        %2141 = vmatpush.bf16.msra.mxu0 %v1587
        %2142 = vmatpush.bf16.msra.mxu0 %v1586
        %2143 = vmatmul.bf16.gmra.mxu0 %v971
        %v2144 = vpop.f32.mrf.mxu0
        %v2145 = vadd.f32 %v2056, %v2144
        %v2146 = vpop.f32.mrf.mxu0
        %v2147 = vadd.f32 %v2058, %v2146
        %2148 = vmatmul.bf16.gmra.mxu0 %v980
        %v2149 = vpop.f32.mrf.mxu0
        %v2150 = vadd.f32 %v2061, %v2149
        %v2151 = vpop.f32.mrf.mxu0
        %v2152 = vadd.f32 %v2063, %v2151
        %2153 = vmatmul.bf16.gmra.mxu0 %v989
        %v2154 = vpop.f32.mrf.mxu0
        %v2155 = vadd.f32 %v2066, %v2154
        %v2156 = vpop.f32.mrf.mxu0
        %v2157 = vadd.f32 %v2068, %v2156
        %2158 = vmatmul.bf16.gmra.mxu0 %v998
        %v2159 = vpop.f32.mrf.mxu0
        %v2160 = vadd.f32 %v2071, %v2159
        %v2161 = vpop.f32.mrf.mxu0
        %v2162 = vadd.f32 %v2073, %v2161
        %2163 = vmatmul.bf16.gmra.mxu0 %v1007
        %v2164 = vpop.f32.mrf.mxu0
        %v2165 = vadd.f32 %v2076, %v2164
        %v2166 = vpop.f32.mrf.mxu0
        %v2167 = vadd.f32 %v2078, %v2166
        %2168 = vmatmul.bf16.gmra.mxu0 %v1016
        %v2169 = vpop.f32.mrf.mxu0
        %v2170 = vadd.f32 %v2081, %v2169
        %v2171 = vpop.f32.mrf.mxu0
        %v2172 = vadd.f32 %v2083, %v2171
        %2173 = vmatmul.bf16.gmra.mxu0 %v1025
        %v2174 = vpop.f32.mrf.mxu0
        %v2175 = vadd.f32 %v2086, %v2174
        %v2176 = vpop.f32.mrf.mxu0
        %v2177 = vadd.f32 %v2088, %v2176
        %2178 = vmatmul.bf16.gmra.mxu0 %v1034
        %v2179 = vpop.f32.mrf.mxu0
        %v2180 = vadd.f32 %v2091, %v2179
        %v2181 = vpop.f32.mrf.mxu0
        %v2182 = vadd.f32 %v2093, %v2181
        %2183 = vmatmul.bf16.gmra.mxu0 %v1043
        %v2184 = vpop.f32.mrf.mxu0
        %v2185 = vadd.f32 %v2096, %v2184
        %v2186 = vpop.f32.mrf.mxu0
        %v2187 = vadd.f32 %v2098, %v2186
        %2188 = vmatmul.bf16.gmra.mxu0 %v1052
        %v2189 = vpop.f32.mrf.mxu0
        %v2190 = vadd.f32 %v2101, %v2189
        %v2191 = vpop.f32.mrf.mxu0
        %v2192 = vadd.f32 %v2103, %v2191
        %2193 = vmatmul.bf16.gmra.mxu0 %v1061
        %v2194 = vpop.f32.mrf.mxu0
        %v2195 = vadd.f32 %v2106, %v2194
        %v2196 = vpop.f32.mrf.mxu0
        %v2197 = vadd.f32 %v2108, %v2196
        %2198 = vmatmul.bf16.gmra.mxu0 %v1070
        %v2199 = vpop.f32.mrf.mxu0
        %v2200 = vadd.f32 %v2111, %v2199
        %v2201 = vpop.f32.mrf.mxu0
        %v2202 = vadd.f32 %v2113, %v2201
        %2203 = vmatmul.bf16.gmra.mxu0 %v1079
        %v2204 = vpop.f32.mrf.mxu0
        %v2205 = vadd.f32 %v2116, %v2204
        %v2206 = vpop.f32.mrf.mxu0
        %v2207 = vadd.f32 %v2118, %v2206
        %2208 = vmatmul.bf16.gmra.mxu0 %v1088
        %v2209 = vpop.f32.mrf.mxu0
        %v2210 = vadd.f32 %v2121, %v2209
        %v2211 = vpop.f32.mrf.mxu0
        %v2212 = vadd.f32 %v2123, %v2211
        %2213 = vmatmul.bf16.gmra.mxu0 %v1097
        %v2214 = vpop.f32.mrf.mxu0
        %v2215 = vadd.f32 %v2126, %v2214
        %v2216 = vpop.f32.mrf.mxu0
        %v2217 = vadd.f32 %v2128, %v2216
        %2218 = vmatmul.bf16.gmra.mxu0 %v1106
        %v2219 = vpop.f32.mrf.mxu0
        %v2220 = vadd.f32 %v2131, %v2219
        %v2221 = vpop.f32.mrf.mxu0
        %v2222 = vadd.f32 %v2133, %v2221
        %2223 = vdwg.mxu0
        %2224 = vmatpush.bf16.msra.mxu0 %v1601
        %2225 = vmatpush.bf16.msra.mxu0 %v1600
        %2226 = vmatpush.bf16.msra.mxu0 %v1599
        %2227 = vmatpush.bf16.msra.mxu0 %v1598
        %2228 = vmatpush.bf16.msra.mxu0 %v1597
        %2229 = vmatpush.bf16.msra.mxu0 %v1596
        %2230 = vmatpush.bf16.msra.mxu0 %v1595
        %2231 = vmatpush.bf16.msra.mxu0 %v1594
        %2232 = vmatmul.bf16.gmra.mxu0 %v972
        %v2233 = vpop.f32.mrf.mxu0
        %v2234 = vadd.f32 %v2145, %v2233
        %v2235 = vpop.f32.mrf.mxu0
        %v2236 = vadd.f32 %v2147, %v2235
        %2237 = vmatmul.bf16.gmra.mxu0 %v981
        %v2238 = vpop.f32.mrf.mxu0
        %v2239 = vadd.f32 %v2150, %v2238
        %v2240 = vpop.f32.mrf.mxu0
        %v2241 = vadd.f32 %v2152, %v2240
        %2242 = vmatmul.bf16.gmra.mxu0 %v990
        %v2243 = vpop.f32.mrf.mxu0
        %v2244 = vadd.f32 %v2155, %v2243
        %v2245 = vpop.f32.mrf.mxu0
        %v2246 = vadd.f32 %v2157, %v2245
        %2247 = vmatmul.bf16.gmra.mxu0 %v999
        %v2248 = vpop.f32.mrf.mxu0
        %v2249 = vadd.f32 %v2160, %v2248
        %v2250 = vpop.f32.mrf.mxu0
        %v2251 = vadd.f32 %v2162, %v2250
        %2252 = vmatmul.bf16.gmra.mxu0 %v1008
        %v2253 = vpop.f32.mrf.mxu0
        %v2254 = vadd.f32 %v2165, %v2253
        %v2255 = vpop.f32.mrf.mxu0
        %v2256 = vadd.f32 %v2167, %v2255
        %2257 = vmatmul.bf16.gmra.mxu0 %v1017
        %v2258 = vpop.f32.mrf.mxu0
        %v2259 = vadd.f32 %v2170, %v2258
        %v2260 = vpop.f32.mrf.mxu0
        %v2261 = vadd.f32 %v2172, %v2260
        %2262 = vmatmul.bf16.gmra.mxu0 %v1026
        %v2263 = vpop.f32.mrf.mxu0
        %v2264 = vadd.f32 %v2175, %v2263
        %v2265 = vpop.f32.mrf.mxu0
        %v2266 = vadd.f32 %v2177, %v2265
        %2267 = vmatmul.bf16.gmra.mxu0 %v1035
        %v2268 = vpop.f32.mrf.mxu0
        %v2269 = vadd.f32 %v2180, %v2268
        %v2270 = vpop.f32.mrf.mxu0
        %v2271 = vadd.f32 %v2182, %v2270
        %2272 = vmatmul.bf16.gmra.mxu0 %v1044
        %v2273 = vpop.f32.mrf.mxu0
        %v2274 = vadd.f32 %v2185, %v2273
        %v2275 = vpop.f32.mrf.mxu0
        %v2276 = vadd.f32 %v2187, %v2275
        %2277 = vmatmul.bf16.gmra.mxu0 %v1053
        %v2278 = vpop.f32.mrf.mxu0
        %v2279 = vadd.f32 %v2190, %v2278
        %v2280 = vpop.f32.mrf.mxu0
        %v2281 = vadd.f32 %v2192, %v2280
        %2282 = vmatmul.bf16.gmra.mxu0 %v1062
        %v2283 = vpop.f32.mrf.mxu0
        %v2284 = vadd.f32 %v2195, %v2283
        %v2285 = vpop.f32.mrf.mxu0
        %v2286 = vadd.f32 %v2197, %v2285
        %2287 = vmatmul.bf16.gmra.mxu0 %v1071
        %v2288 = vpop.f32.mrf.mxu0
        %v2289 = vadd.f32 %v2200, %v2288
        %v2290 = vpop.f32.mrf.mxu0
        %v2291 = vadd.f32 %v2202, %v2290
        %2292 = vmatmul.bf16.gmra.mxu0 %v1080
        %v2293 = vpop.f32.mrf.mxu0
        %v2294 = vadd.f32 %v2205, %v2293
        %v2295 = vpop.f32.mrf.mxu0
        %v2296 = vadd.f32 %v2207, %v2295
        %2297 = vmatmul.bf16.gmra.mxu0 %v1089
        %v2298 = vpop.f32.mrf.mxu0
        %v2299 = vadd.f32 %v2210, %v2298
        %v2300 = vpop.f32.mrf.mxu0
        %v2301 = vadd.f32 %v2212, %v2300
        %2302 = vmatmul.bf16.gmra.mxu0 %v1098
        %v2303 = vpop.f32.mrf.mxu0
        %v2304 = vadd.f32 %v2215, %v2303
        %v2305 = vpop.f32.mrf.mxu0
        %v2306 = vadd.f32 %v2217, %v2305
        %2307 = vmatmul.bf16.gmra.mxu0 %v1107
        %v2308 = vpop.f32.mrf.mxu0
        %v2309 = vadd.f32 %v2220, %v2308
        %v2310 = vpop.f32.mrf.mxu0
        %v2311 = vadd.f32 %v2222, %v2310
        %2312 = vdwg.mxu0
        %2313 = vmatpush.bf16.msra.mxu0 %v1609
        %2314 = vmatpush.bf16.msra.mxu0 %v1608
        %2315 = vmatpush.bf16.msra.mxu0 %v1607
        %2316 = vmatpush.bf16.msra.mxu0 %v1606
        %2317 = vmatpush.bf16.msra.mxu0 %v1605
        %2318 = vmatpush.bf16.msra.mxu0 %v1604
        %2319 = vmatpush.bf16.msra.mxu0 %v1603
        %2320 = vmatpush.bf16.msra.mxu0 %v1602
        %2321 = vmatmul.bf16.gmra.mxu0 %v973
        %v2322 = vpop.f32.mrf.mxu0
        %v2323 = vadd.f32 %v2234, %v2322
        %v2324 = vpop.f32.mrf.mxu0
        %v2325 = vadd.f32 %v2236, %v2324
        %2326 = vmatmul.bf16.gmra.mxu0 %v982
        %v2327 = vpop.f32.mrf.mxu0
        %v2328 = vadd.f32 %v2239, %v2327
        %v2329 = vpop.f32.mrf.mxu0
        %v2330 = vadd.f32 %v2241, %v2329
        %2331 = vmatmul.bf16.gmra.mxu0 %v991
        %v2332 = vpop.f32.mrf.mxu0
        %v2333 = vadd.f32 %v2244, %v2332
        %v2334 = vpop.f32.mrf.mxu0
        %v2335 = vadd.f32 %v2246, %v2334
        %2336 = vmatmul.bf16.gmra.mxu0 %v1000
        %v2337 = vpop.f32.mrf.mxu0
        %v2338 = vadd.f32 %v2249, %v2337
        %v2339 = vpop.f32.mrf.mxu0
        %v2340 = vadd.f32 %v2251, %v2339
        %2341 = vmatmul.bf16.gmra.mxu0 %v1009
        %v2342 = vpop.f32.mrf.mxu0
        %v2343 = vadd.f32 %v2254, %v2342
        %v2344 = vpop.f32.mrf.mxu0
        %v2345 = vadd.f32 %v2256, %v2344
        %2346 = vmatmul.bf16.gmra.mxu0 %v1018
        %v2347 = vpop.f32.mrf.mxu0
        %v2348 = vadd.f32 %v2259, %v2347
        %v2349 = vpop.f32.mrf.mxu0
        %v2350 = vadd.f32 %v2261, %v2349
        %2351 = vmatmul.bf16.gmra.mxu0 %v1027
        %v2352 = vpop.f32.mrf.mxu0
        %v2353 = vadd.f32 %v2264, %v2352
        %v2354 = vpop.f32.mrf.mxu0
        %v2355 = vadd.f32 %v2266, %v2354
        %2356 = vmatmul.bf16.gmra.mxu0 %v1036
        %v2357 = vpop.f32.mrf.mxu0
        %v2358 = vadd.f32 %v2269, %v2357
        %v2359 = vpop.f32.mrf.mxu0
        %v2360 = vadd.f32 %v2271, %v2359
        %2361 = vmatmul.bf16.gmra.mxu0 %v1045
        %v2362 = vpop.f32.mrf.mxu0
        %v2363 = vadd.f32 %v2274, %v2362
        %v2364 = vpop.f32.mrf.mxu0
        %v2365 = vadd.f32 %v2276, %v2364
        %2366 = vmatmul.bf16.gmra.mxu0 %v1054
        %v2367 = vpop.f32.mrf.mxu0
        %v2368 = vadd.f32 %v2279, %v2367
        %v2369 = vpop.f32.mrf.mxu0
        %v2370 = vadd.f32 %v2281, %v2369
        %2371 = vmatmul.bf16.gmra.mxu0 %v1063
        %v2372 = vpop.f32.mrf.mxu0
        %v2373 = vadd.f32 %v2284, %v2372
        %v2374 = vpop.f32.mrf.mxu0
        %v2375 = vadd.f32 %v2286, %v2374
        %2376 = vmatmul.bf16.gmra.mxu0 %v1072
        %v2377 = vpop.f32.mrf.mxu0
        %v2378 = vadd.f32 %v2289, %v2377
        %v2379 = vpop.f32.mrf.mxu0
        %v2380 = vadd.f32 %v2291, %v2379
        %2381 = vmatmul.bf16.gmra.mxu0 %v1081
        %v2382 = vpop.f32.mrf.mxu0
        %v2383 = vadd.f32 %v2294, %v2382
        %v2384 = vpop.f32.mrf.mxu0
        %v2385 = vadd.f32 %v2296, %v2384
        %2386 = vmatmul.bf16.gmra.mxu0 %v1090
        %v2387 = vpop.f32.mrf.mxu0
        %v2388 = vadd.f32 %v2299, %v2387
        %v2389 = vpop.f32.mrf.mxu0
        %v2390 = vadd.f32 %v2301, %v2389
        %2391 = vmatmul.bf16.gmra.mxu0 %v1099
        %v2392 = vpop.f32.mrf.mxu0
        %v2393 = vadd.f32 %v2304, %v2392
        %v2394 = vpop.f32.mrf.mxu0
        %v2395 = vadd.f32 %v2306, %v2394
        %2396 = vmatmul.bf16.gmra.mxu0 %v1108
        %v2397 = vpop.f32.mrf.mxu0
        %v2398 = vadd.f32 %v2309, %v2397
        %v2399 = vpop.f32.mrf.mxu0
        %v2400 = vadd.f32 %v2311, %v2399
        %2401 = vdwg.mxu0
        %2402 = vmatpush.bf16.msra.mxu0 %v1617
        %2403 = vmatpush.bf16.msra.mxu0 %v1616
        %2404 = vmatpush.bf16.msra.mxu0 %v1615
        %2405 = vmatpush.bf16.msra.mxu0 %v1614
        %2406 = vmatpush.bf16.msra.mxu0 %v1613
        %2407 = vmatpush.bf16.msra.mxu0 %v1612
        %2408 = vmatpush.bf16.msra.mxu0 %v1611
        %2409 = vmatpush.bf16.msra.mxu0 %v1610
        %2410 = vmatmul.bf16.gmra.mxu0 %v974
        %v2411 = vpop.f32.mrf.mxu0
        %v2412 = vadd.f32 %v2323, %v2411
        %v2413 = vpop.f32.mrf.mxu0
        %v2414 = vadd.f32 %v2325, %v2413
        %2415 = vmatmul.bf16.gmra.mxu0 %v983
        %v2416 = vpop.f32.mrf.mxu0
        %v2417 = vadd.f32 %v2328, %v2416
        %v2418 = vpop.f32.mrf.mxu0
        %v2419 = vadd.f32 %v2330, %v2418
        %2420 = vmatmul.bf16.gmra.mxu0 %v992
        %v2421 = vpop.f32.mrf.mxu0
        %v2422 = vadd.f32 %v2333, %v2421
        %v2423 = vpop.f32.mrf.mxu0
        %v2424 = vadd.f32 %v2335, %v2423
        %2425 = vmatmul.bf16.gmra.mxu0 %v1001
        %v2426 = vpop.f32.mrf.mxu0
        %v2427 = vadd.f32 %v2338, %v2426
        %v2428 = vpop.f32.mrf.mxu0
        %v2429 = vadd.f32 %v2340, %v2428
        %2430 = vmatmul.bf16.gmra.mxu0 %v1010
        %v2431 = vpop.f32.mrf.mxu0
        %v2432 = vadd.f32 %v2343, %v2431
        %v2433 = vpop.f32.mrf.mxu0
        %v2434 = vadd.f32 %v2345, %v2433
        %2435 = vmatmul.bf16.gmra.mxu0 %v1019
        %v2436 = vpop.f32.mrf.mxu0
        %v2437 = vadd.f32 %v2348, %v2436
        %v2438 = vpop.f32.mrf.mxu0
        %v2439 = vadd.f32 %v2350, %v2438
        %2440 = vmatmul.bf16.gmra.mxu0 %v1028
        %v2441 = vpop.f32.mrf.mxu0
        %v2442 = vadd.f32 %v2353, %v2441
        %v2443 = vpop.f32.mrf.mxu0
        %v2444 = vadd.f32 %v2355, %v2443
        %2445 = vmatmul.bf16.gmra.mxu0 %v1037
        %v2446 = vpop.f32.mrf.mxu0
        %v2447 = vadd.f32 %v2358, %v2446
        %v2448 = vpop.f32.mrf.mxu0
        %v2449 = vadd.f32 %v2360, %v2448
        %2450 = vmatmul.bf16.gmra.mxu0 %v1046
        %v2451 = vpop.f32.mrf.mxu0
        %v2452 = vadd.f32 %v2363, %v2451
        %v2453 = vpop.f32.mrf.mxu0
        %v2454 = vadd.f32 %v2365, %v2453
        %2455 = vmatmul.bf16.gmra.mxu0 %v1055
        %v2456 = vpop.f32.mrf.mxu0
        %v2457 = vadd.f32 %v2368, %v2456
        %v2458 = vpop.f32.mrf.mxu0
        %v2459 = vadd.f32 %v2370, %v2458
        %2460 = vmatmul.bf16.gmra.mxu0 %v1064
        %v2461 = vpop.f32.mrf.mxu0
        %v2462 = vadd.f32 %v2373, %v2461
        %v2463 = vpop.f32.mrf.mxu0
        %v2464 = vadd.f32 %v2375, %v2463
        %2465 = vmatmul.bf16.gmra.mxu0 %v1073
        %v2466 = vpop.f32.mrf.mxu0
        %v2467 = vadd.f32 %v2378, %v2466
        %v2468 = vpop.f32.mrf.mxu0
        %v2469 = vadd.f32 %v2380, %v2468
        %2470 = vmatmul.bf16.gmra.mxu0 %v1082
        %v2471 = vpop.f32.mrf.mxu0
        %v2472 = vadd.f32 %v2383, %v2471
        %v2473 = vpop.f32.mrf.mxu0
        %v2474 = vadd.f32 %v2385, %v2473
        %2475 = vmatmul.bf16.gmra.mxu0 %v1091
        %v2476 = vpop.f32.mrf.mxu0
        %v2477 = vadd.f32 %v2388, %v2476
        %v2478 = vpop.f32.mrf.mxu0
        %v2479 = vadd.f32 %v2390, %v2478
        %2480 = vmatmul.bf16.gmra.mxu0 %v1100
        %v2481 = vpop.f32.mrf.mxu0
        %v2482 = vadd.f32 %v2393, %v2481
        %v2483 = vpop.f32.mrf.mxu0
        %v2484 = vadd.f32 %v2395, %v2483
        %2485 = vmatmul.bf16.gmra.mxu0 %v1109
        %v2486 = vpop.f32.mrf.mxu0
        %v2487 = vadd.f32 %v2398, %v2486
        %v2488 = vpop.f32.mrf.mxu0
        %v2489 = vadd.f32 %v2400, %v2488
        %2490 = vdwg.mxu0
        %v2491 = vpack.c.bf16 %v2412, %v2412
        %v2492 = vpack.c.bf16 %v2414, %v2414
        %v2493 = vpack.c.bf16 %v2417, %v2417
        %v2494 = vpack.c.bf16 %v2419, %v2419
        %v2495 = vpack.c.bf16 %v2422, %v2422
        %v2496 = vpack.c.bf16 %v2424, %v2424
        %v2497 = vpack.c.bf16 %v2427, %v2427
        %v2498 = vpack.c.bf16 %v2429, %v2429
        %v2499 = vpack.c.bf16 %v2432, %v2432
        %v2500 = vpack.c.bf16 %v2434, %v2434
        %v2501 = vpack.c.bf16 %v2437, %v2437
        %v2502 = vpack.c.bf16 %v2439, %v2439
        %v2503 = vpack.c.bf16 %v2442, %v2442
        %v2504 = vpack.c.bf16 %v2444, %v2444
        %v2505 = vpack.c.bf16 %v2447, %v2447
        %v2506 = vpack.c.bf16 %v2449, %v2449
        %v2507 = vpack.c.bf16 %v2452, %v2452
        %v2508 = vpack.c.bf16 %v2454, %v2454
        %v2509 = vpack.c.bf16 %v2457, %v2457
        %v2510 = vpack.c.bf16 %v2459, %v2459
        %v2511 = vpack.c.bf16 %v2462, %v2462
        %v2512 = vpack.c.bf16 %v2464, %v2464
        %v2513 = vpack.c.bf16 %v2467, %v2467
        %v2514 = vpack.c.bf16 %v2469, %v2469
        %v2515 = vpack.c.bf16 %v2472, %v2472
        %v2516 = vpack.c.bf16 %v2474, %v2474
        %v2517 = vpack.c.bf16 %v2477, %v2477
        %v2518 = vpack.c.bf16 %v2479, %v2479
        %v2519 = vpack.c.bf16 %v2482, %v2482
        %v2520 = vpack.c.bf16 %v2484, %v2484
        %v2521 = vpack.c.bf16 %v2487, %v2487
        %v2522 = vpack.c.bf16 %v2489, %v2489
        %2523 = vst [vmem:[%s281] sm:$0xf] %v2491
        %2524 = vst [vmem:[%s281 + $0x4] sm:$0xf] %v2492
        %2525 = vst [vmem:[%s281 + $0x8] sm:$0xf] %v2493
        %2526 = vst [vmem:[%s281 + $0xc] sm:$0xf] %v2494
        %2527 = vst [vmem:[%s281 + $0x10] sm:$0xf] %v2495
        %2528 = vst [vmem:[%s281 + $0x14] sm:$0xf] %v2496
        %2529 = vst [vmem:[%s281 + $0x18] sm:$0xf] %v2497
        %2530 = vst [vmem:[%s281 + $0x1c] sm:$0xf] %v2498
        %2531 = vst [vmem:[%s281 + $0x20] sm:$0xf] %v2499
        %2532 = vst [vmem:[%s281 + $0x24] sm:$0xf] %v2500
        %2533 = vst [vmem:[%s281 + $0x28] sm:$0xf] %v2501
        %2534 = vst [vmem:[%s281 + $0x2c] sm:$0xf] %v2502
        %2535 = vst [vmem:[%s281 + $0x30] sm:$0xf] %v2503
        %2536 = vst [vmem:[%s281 + $0x34] sm:$0xf] %v2504
        %2537 = vst [vmem:[%s281 + $0x38] sm:$0xf] %v2505
        %2538 = vst [vmem:[%s281 + $0x3c] sm:$0xf] %v2506
        %2539 = vst [vmem:[%s281 + $0x40] sm:$0xf] %v2507
        %2540 = vst [vmem:[%s281 + $0x44] sm:$0xf] %v2508
        %2541 = vst [vmem:[%s281 + $0x48] sm:$0xf] %v2509
        %2542 = vst [vmem:[%s281 + $0x4c] sm:$0xf] %v2510
        %2543 = vst [vmem:[%s281 + $0x50] sm:$0xf] %v2511
        %2544 = vst [vmem:[%s281 + $0x54] sm:$0xf] %v2512
        %2545 = vst [vmem:[%s281 + $0x58] sm:$0xf] %v2513
        %2546 = vst [vmem:[%s281 + $0x5c] sm:$0xf] %v2514
        %2547 = vst [vmem:[%s281 + $0x60] sm:$0xf] %v2515
        %2548 = vst [vmem:[%s281 + $0x64] sm:$0xf] %v2516
        %2549 = vst [vmem:[%s281 + $0x68] sm:$0xf] %v2517
        %2550 = vst [vmem:[%s281 + $0x6c] sm:$0xf] %v2518
        %2551 = vst [vmem:[%s281 + $0x70] sm:$0xf] %v2519
        %2552 = vst [vmem:[%s281 + $0x74] sm:$0xf] %v2520
        %2553 = vst [vmem:[%s281 + $0x78] sm:$0xf] %v2521
        %2554 = vst [vmem:[%s281 + $0x7c] sm:$0xf] %v2522
        %v2555 = vadd.f32 %v2412, %v2414
        %v2556 = vadd.f32 %v2555, %v2417
        %v2557 = vadd.f32 %v2556, %v2419
        %v2558 = vadd.f32 %v2557, %v2422
        %v2559 = vadd.f32 %v2558, %v2424
        %v2560 = vadd.f32 %v2559, %v2427
        %v2561 = vadd.f32 %v2560, %v2429
        %v2562 = vadd.f32 %v2561, %v2432
        %v2563 = vadd.f32 %v2562, %v2434
        %v2564 = vadd.f32 %v2563, %v2437
        %v2565 = vadd.f32 %v2564, %v2439
        %v2566 = vadd.f32 %v2565, %v2442
        %v2567 = vadd.f32 %v2566, %v2444
        %v2568 = vadd.f32 %v2567, %v2447
        %v2569 = vadd.f32 %v2568, %v2449
        %v2570 = vadd.f32 %v2569, %v2452
        %v2571 = vadd.f32 %v2570, %v2454
        %v2572 = vadd.f32 %v2571, %v2457
        %v2573 = vadd.f32 %v2572, %v2459
        %v2574 = vadd.f32 %v2573, %v2462
        %v2575 = vadd.f32 %v2574, %v2464
        %v2576 = vadd.f32 %v2575, %v2467
        %v2577 = vadd.f32 %v2576, %v2469
        %v2578 = vadd.f32 %v2577, %v2472
        %v2579 = vadd.f32 %v2578, %v2474
        %v2580 = vadd.f32 %v2579, %v2477
        %v2581 = vadd.f32 %v2580, %v2479
        %v2582 = vadd.f32 %v2581, %v2482
        %v2583 = vadd.f32 %v2582, %v2484
        %v2584 = vadd.f32 %v2583, %v2487
        %v2585 = vadd.f32 %v2584, %v2489
        %v2586 = vrot.slane %v2585, 4
        %v2587 = vadd.f32 %v2585, %v2586
        %v2588 = vrot.slane %v2587, 2
        %v2589 = vadd.f32 %v2587, %v2588
        %v2590 = vrot.slane %v2589, 1
        %v2591 = vadd.f32 %v2589, %v2590
        %v2592 = vmul.f32 %v2412, %v2412
        %v2593 = vmul.f32 %v2414, %v2414
        %v2594 = vmul.f32 %v2417, %v2417
        %v2595 = vmul.f32 %v2419, %v2419
        %v2596 = vmul.f32 %v2422, %v2422
        %v2597 = vmul.f32 %v2424, %v2424
        %v2598 = vmul.f32 %v2427, %v2427
        %v2599 = vmul.f32 %v2429, %v2429
        %v2600 = vmul.f32 %v2432, %v2432
        %v2601 = vmul.f32 %v2434, %v2434
        %v2602 = vmul.f32 %v2437, %v2437
        %v2603 = vmul.f32 %v2439, %v2439
        %v2604 = vmul.f32 %v2442, %v2442
        %v2605 = vmul.f32 %v2444, %v2444
        %v2606 = vmul.f32 %v2447, %v2447
        %v2607 = vmul.f32 %v2449, %v2449
        %v2608 = vmul.f32 %v2452, %v2452
        %v2609 = vmul.f32 %v2454, %v2454
        %v2610 = vmul.f32 %v2457, %v2457
        %v2611 = vmul.f32 %v2459, %v2459
        %v2612 = vmul.f32 %v2462, %v2462
        %v2613 = vmul.f32 %v2464, %v2464
        %v2614 = vmul.f32 %v2467, %v2467
        %v2615 = vmul.f32 %v2469, %v2469
        %v2616 = vmul.f32 %v2472, %v2472
        %v2617 = vmul.f32 %v2474, %v2474
        %v2618 = vmul.f32 %v2477, %v2477
        %v2619 = vmul.f32 %v2479, %v2479
        %v2620 = vmul.f32 %v2482, %v2482
        %v2621 = vmul.f32 %v2484, %v2484
        %v2622 = vmul.f32 %v2487, %v2487
        %v2623 = vmul.f32 %v2489, %v2489
        %v2624 = vadd.f32 %v2592, %v2593
        %v2625 = vadd.f32 %v2624, %v2594
        %v2626 = vadd.f32 %v2625, %v2595
        %v2627 = vadd.f32 %v2626, %v2596
        %v2628 = vadd.f32 %v2627, %v2597
        %v2629 = vadd.f32 %v2628, %v2598
        %v2630 = vadd.f32 %v2629, %v2599
        %v2631 = vadd.f32 %v2630, %v2600
        %v2632 = vadd.f32 %v2631, %v2601
        %v2633 = vadd.f32 %v2632, %v2602
        %v2634 = vadd.f32 %v2633, %v2603
        %v2635 = vadd.f32 %v2634, %v2604
        %v2636 = vadd.f32 %v2635, %v2605
        %v2637 = vadd.f32 %v2636, %v2606
        %v2638 = vadd.f32 %v2637, %v2607
        %v2639 = vadd.f32 %v2638, %v2608
        %v2640 = vadd.f32 %v2639, %v2609
        %v2641 = vadd.f32 %v2640, %v2610
        %v2642 = vadd.f32 %v2641, %v2611
        %v2643 = vadd.f32 %v2642, %v2612
        %v2644 = vadd.f32 %v2643, %v2613
        %v2645 = vadd.f32 %v2644, %v2614
        %v2646 = vadd.f32 %v2645, %v2615
        %v2647 = vadd.f32 %v2646, %v2616
        %v2648 = vadd.f32 %v2647, %v2617
        %v2649 = vadd.f32 %v2648, %v2618
        %v2650 = vadd.f32 %v2649, %v2619
        %v2651 = vadd.f32 %v2650, %v2620
        %v2652 = vadd.f32 %v2651, %v2621
        %v2653 = vadd.f32 %v2652, %v2622
        %v2654 = vadd.f32 %v2653, %v2623
        %v2655 = vrot.slane %v2654, 4
        %v2656 = vadd.f32 %v2654, %v2655
        %v2657 = vrot.slane %v2656, 2
        %v2658 = vadd.f32 %v2656, %v2657
        %v2659 = vrot.slane %v2658, 1
        %v2660 = vadd.f32 %v2658, %v2659
        %vm2661 = vcmask 1040384
        %v2662 = vsel %vm2661, %v2591, %v2660
        %vm2663 = vcmask 1041408
        %v2664 = vsel %vm2663, %v2662, 0.0
        %2665 = vst [vmem:[%s288] sm:$0xff] %v2664
        %s2666 = sand.u32 %s124, 1
        %s2667 = scalar_lea.sflag [#allocation4], %s2666
        %s2668 = sand.u32 %s124, 1
        %s2669 = smul.addr %s2668, 128
        %s2670 = scalar_lea.vmem [#allocation8], %s2669
        %s2671 = sand.u32 %s150, 1
        %s2672 = scalar_lea.sflag [#allocation10], %s2671
        %s2673 = sand.u32 %s150, 1
        %s2674 = smul.addr %s2673, 8
        %s2675 = scalar_lea.vmem [#allocation9], %s2674
        // Predicated region
        $region49: #{tpu_custom_call.1} parent=35 // pred_check
          %p2676 = pneg %p134
        $region50: #{tpu_custom_call.1} parent=35 // pred_check_branch
          %2678 = sbr.rel (%p2676) target = $region52
        $region51: #{tpu_custom_call.1} parent=35 // pred_region
          %s2679 = smul.u32 32, %s27
          %2681 = vsyncadd %s2667, 0
          %s2682 = smul.addr %s2679, 4
          %s2683 = scalar_lea.hbm %s4, %s2682
          %s2684 = sshll.u32 %s2670, 4
          %s2685 = int_to_ptr.vmem [resolvable:$true] %s2684
          %s2686 = sshll.u32 %s2683, 4
          %s2687 = int_to_ptr.hbm [resolvable:$true] %s2686
          %2692 = dma.vmem_to_hbm [thread:$0]  %s2685, 2048, %s2687, %s2667, 64, 64, 4
        $region52: #{tpu_custom_call.1} parent=35 // pred_fallthru
          _
        // Predicated region
        $region53: #{tpu_custom_call.1} parent=35 // pred_check
          %p2693 = pneg %p160
        $region54: #{tpu_custom_call.1} parent=35 // pred_check_branch
          %2695 = sbr.rel (%p2693) target = $region56
        $region55: #{tpu_custom_call.1} parent=35 // pred_region
          %2697 = vsyncadd %s2672, 0
          %s2698 = smul.addr %s27, 8
          %s2699 = scalar_lea.hbm %s5, %s2698
          %s2701 = sshll.u32 %s2675, 4
          %s2702 = int_to_ptr.vmem [resolvable:$true] %s2701
          %s2703 = sshll.u32 %s2699, 4
          %s2704 = int_to_ptr.hbm [resolvable:$true] %s2703
          %2706 = dma.vmem_to_hbm [thread:$0]  %s2702, 128, %s2704, %s2672
        $region56: #{tpu_custom_call.1} parent=35 // pred_fallthru
          _
      $region36: #{tpu_custom_call.1} parent=5 // pred_fallthru
        _
      %p2707 = scmp.le.s32.totalorder 2, %s22
      // Predicated region
      $region57: #{tpu_custom_call.1} parent=5 // pred_check
        %p2708 = pneg %p2707
      $region58: #{tpu_custom_call.1} parent=5 // pred_check_branch
        %2710 = sbr.rel (%p2708) target = $region60
      $region59: #{tpu_custom_call.1} parent=5 // pred_region
        %s2711 = ssub.s32 %s22, 2
        // Predicated region
        $region61: #{tpu_custom_call.1} parent=59 // pred_check
          %p2712 = pneg %p140
        $region62: #{tpu_custom_call.1} parent=59 // pred_check_branch
          %2714 = sbr.rel (%p2712) target = $region64
        $region63: #{tpu_custom_call.1} parent=59 // pred_region
          %s2715 = sand.u32 %s125, 1
          %s2716 = scalar_lea.sflag [#allocation4], %s2715
          %s2717 = sand.u32 %s125, 1
          %s2718 = smul.addr %s2717, 128
          %s2719 = scalar_lea.vmem [#allocation8], %s2718
          %2721 = dma.done %s2716, 2048
        $region64: #{tpu_custom_call.1} parent=59 // pred_fallthru
          _
        // Predicated region
        $region65: #{tpu_custom_call.1} parent=59 // pred_check
          %p2722 = pneg %p166
        $region66: #{tpu_custom_call.1} parent=59 // pred_check_branch
          %2724 = sbr.rel (%p2722) target = $region68
        $region67: #{tpu_custom_call.1} parent=59 // pred_region
          %s2725 = sand.u32 %s151, 1
          %s2726 = scalar_lea.sflag [#allocation10], %s2725
          %s2727 = sand.u32 %s151, 1
          %s2728 = smul.addr %s2727, 8
          %s2729 = scalar_lea.vmem [#allocation9], %s2728
          %2731 = dma.done %s2726, 128
        $region68: #{tpu_custom_call.1} parent=59 // pred_fallthru
          _
      $region60: #{tpu_custom_call.1} parent=5 // pred_fallthru
        _
    $region6: #{tpu_custom_call.1} parent=1 // loop_footer
      %s26 = sadd.s32 1, %s22
    $region7: #{tpu_custom_call.1} parent=1 // loop_footer_branch
      %21 = sbr.rel target = $region3
    $region8: #{tpu_custom_call.1} parent=1 // loop_exit
      _
    %2732 = vsyncpa [#allocation3], 1
    %s2733 = scalar_lea.sflag [#allocation3], 1
    %2734 = vsyncpa %s2733, 1
    %2735 = vsyncpa [#allocation6], 1
    %2736 = vsyncpa [#allocation4], 1
    %s2737 = scalar_lea.sflag [#allocation4], 1
    %2738 = vsyncpa %s2737, 1
    %2739 = vsyncpa [#allocation10], 1
    %s2740 = scalar_lea.sflag [#allocation10], 1
    %2741 = vsyncpa %s2740, 1

</llo_original>
